<compile_context>
chip_gen: v5e
topology: v5e:2x2
jax: 0.10.0
libtpu: 0.0.40
codegen_flags: <defaults>
</compile_context>

<pallas_src>
import functools
import math

import jax
import jax.numpy as jnp
from jax.experimental import pallas as pl
from jax.experimental.pallas import tpu as pltpu

BERT_LN_EPS = 1e-12
VIT_LN_EPS = 1e-6
MASK_NEG = 1e30          # additive key-padding bias magnitude (finite "-inf")


# ----------------------------- in-kernel helpers -----------------------------
def _ln(x, g, b, eps):
    mu = jnp.mean(x, axis=-1, keepdims=True)
    var = jnp.mean((x - mu) ** 2, axis=-1, keepdims=True)
    return (x - mu) * jax.lax.rsqrt(var + eps) * g + b


def _erf(x):
    # fp32 erf approximation (A&S 7.1.26, |err| ~ 1.5e-7) — matches nn.GELU()
    # (erf-based).  exp() goes to the EUP slot; the polynomial is VALU work but
    # sits inside MXU slack after the matmul restructuring.
    a1, a2, a3, a4, a5 = 0.254829592, -0.284496736, 1.421413741, -1.453152027, 1.061405429
    p = 0.3275911
    ax = jnp.abs(x)
    t = 1.0 / (1.0 + p * ax)
    y = 1.0 - (((((a5 * t + a4) * t + a3) * t + a2) * t + a1) * t) * jnp.exp(-ax * ax)
    return jnp.where(x >= 0, y, -y)


def _gelu_exact(x):
    # nn.GELU() default (erf-based).
    # TODO(synk): tanh-GELU (EUP) is ~free if ~1e-3 deviation is acceptable.
    return 0.5 * x * (1.0 + _erf(x * (1.0 / math.sqrt(2.0))))


# --------------------------------- kernel ------------------------------------
def tower_kernel(x_in_ref, bias_ref, eg_ref, eb_ref, ex_ref, fg_ref, fb_ref,
                 ln1g_ref, ln1b_ref, wqkv_ref, bqkv_ref, wp_ref, bp_ref,
                 ln2g_ref, ln2b_ref, w1_ref, b1_ref, w2_ref, b2_ref,
                 o_ref, x_acc, *, num_heads):
    l = pl.program_id(1)
    n_layers = pl.num_programs(1)
    TB, S, H = x_acc.shape
    T = TB * S
    nh = num_heads
    hd = H // nh
    scale = float(hd) ** -0.5

    # ---- l == 0: finish BertEmbeddings (LayerNorm) + extra token-type add ----
    @pl.when(l == 0)
    def _():
        y = _ln(x_in_ref[...], eg_ref[...], eb_ref[...], BERT_LN_EPS)
        x_acc[...] = y + ex_ref[...]

    x = x_acc[...]                                   # (TB, S, H) f32 residual stream

    # --------------- multi-head self-attention -------------------------------
    h1 = _ln(x, ln1g_ref[0], ln1b_ref[0], VIT_LN_EPS)
    # Fused QKV: one full-width (T,H)x(H,3H) bf16 matmul, f32 accumulate.
    qkv = jnp.dot(h1.reshape(T, H).astype(jnp.bfloat16), wqkv_ref[0],
                  preferred_element_type=jnp.float32) + bqkv_ref[0]        # (T, 3H)
    qkv = qkv.reshape(TB, S, 3 * H)

    # Additive key-padding bias, hoisted once out of the head loop.
    bias = jnp.broadcast_to(bias_ref[...], (TB, S, S))                     # (TB,S,S)

    ctx_heads = []
    for h in range(nh):                               # static unroll over heads
        qh = qkv[:, :, h * hd:(h + 1) * hd].astype(jnp.bfloat16)           # (TB,S,hd)
        kh = qkv[:, :, H + h * hd:H + (h + 1) * hd].astype(jnp.bfloat16)
        vh = qkv[:, :, 2 * H + h * hd:2 * H + (h + 1) * hd].astype(jnp.bfloat16)
        s = jnp.einsum('bqd,bkd->bqk', qh, kh,
                       preferred_element_type=jnp.float32) * scale + bias  # (TB,S,S)
        s = s - jnp.max(s, axis=-1, keepdims=True)
        e = jnp.exp(s)
        p = e * pl.reciprocal(jnp.sum(e, axis=-1, keepdims=True), approx=True)
        ctx_heads.append(jnp.einsum('bqk,bkd->bqd', p.astype(jnp.bfloat16), vh,
                                    preferred_element_type=jnp.float32))   # (TB,S,hd)
    ctx = jnp.concatenate(ctx_heads, axis=-1)                              # (TB,S,H)

    # Single full-depth output projection (K = H).
    proj = jnp.dot(ctx.reshape(T, H).astype(jnp.bfloat16), wp_ref[0],
                   preferred_element_type=jnp.float32) + bp_ref[0]         # (T, H)
    x = x + proj.reshape(TB, S, H)

    # --------------------------------- MLP -----------------------------------
    h2 = _ln(x, ln2g_ref[0], ln2b_ref[0], VIT_LN_EPS)
    m = jnp.dot(h2.reshape(T, H).astype(jnp.bfloat16), w1_ref[0],
                preferred_element_type=jnp.float32) + b1_ref[0]            # (T, 4H)
    m = _gelu_exact(m)
    m = jnp.dot(m.astype(jnp.bfloat16), w2_ref[0],
                preferred_element_type=jnp.float32) + b2_ref[0]            # (T, H)
    x = x + m.reshape(TB, S, H)

    x_acc[...] = x

    # ---- l == L-1: fold in transformer.norm and emit the features -----------
    @pl.when(l == n_layers - 1)
    def _():
        o_ref[...] = _ln(x, fg_ref[...], fb_ref[...], VIT_LN_EPS)


# ------------------------- weight packing (wrapper-side) ----------------------
def pack_params(params):
    def stack(fn):
        return jnp.stack([fn(p) for p in params['blocks']], axis=0)

    return dict(
        ln1g=stack(lambda p: p['ln1_g'][None]),                         # (L,1,H)
        ln1b=stack(lambda p: p['ln1_b'][None]),
        wqkv=stack(lambda p: p['qkv_w'].T).astype(jnp.bfloat16),        # (L,H,3H)
        bqkv=stack(lambda p: p['qkv_b'][None]),                         # (L,1,3H)
        wp=stack(lambda p: p['proj_w'].T).astype(jnp.bfloat16),         # (L,H,H)
        bp=stack(lambda p: p['proj_b'][None]),                          # (L,1,H)
        ln2g=stack(lambda p: p['ln2_g'][None]),
        ln2b=stack(lambda p: p['ln2_b'][None]),
        w1=stack(lambda p: p['fc1_w'].T).astype(jnp.bfloat16),          # (L,H,Mlp)
        b1=stack(lambda p: p['fc1_b'][None]),                           # (L,1,Mlp)
        w2=stack(lambda p: p['fc2_w'].T).astype(jnp.bfloat16),          # (L,Mlp,H)
        b2=stack(lambda p: p['fc2_b'][None]),                           # (L,1,H)
    )


# ---------------------------------- wrapper -----------------------------------
def text_feature_extractor(text_ids, text_masks, params, cfg, batch_tile=8):
    B, S0 = text_ids.shape
    H = cfg['hidden_size']
    L = cfg['num_layers']
    nh = cfg['num_heads']
    Mlp = cfg['mlp_ratio'] * H

    # Pad S to a sublane multiple and B to a multiple of the batch tile; padded
    # positions carry mask=0 (additive -1e30 bias) and are sliced off at the end.
    S = max(8, ((S0 + 7) // 8) * 8)
    TB = max(1, min(batch_tile, B))
    Bp = ((B + TB - 1) // TB) * TB

    ids = jnp.zeros((Bp, S), jnp.int32).at[:B, :S0].set(text_ids.astype(jnp.int32))
    msk = jnp.zeros((Bp, S), jnp.int32).at[:B, :S0].set(text_masks.astype(jnp.int32))

    pos = params['pos_emb']
    if pos.shape[0] < S:
        pos = jnp.zeros((S, H), pos.dtype).at[:pos.shape[0]].set(pos)

    # Embedding-table gather + pre-LN sum stay in XLA (data-dependent gather);
    # everything downstream (both LayerNorms, all L blocks) is one fused kernel.
    x_in = (jnp.take(params['word_emb'], ids, axis=0)
            + pos[:S][None]
            + params['bert_ttype_emb'][0][None, None]).astype(jnp.float32)
    mask_bias = ((msk.astype(jnp.float32) - 1.0) * MASK_NEG)[:, None, :]   # (Bp,1,S)

    w = pack_params(params)
    eg = params['emb_ln_g'][None]
    eb = params['emb_ln_b'][None]
    ex = params['extra_ttype_emb'][0][None]          # token_type_embeddings(zeros)
    fg = params['final_ln_g'][None]
    fb = params['final_ln_b'][None]

    args = [x_in, mask_bias, eg, eb, ex, fg, fb,
            w['ln1g'], w['ln1b'], w['wqkv'], w['bqkv'], w['wp'], w['bp'],
            w['ln2g'], w['ln2b'], w['w1'], w['b1'], w['w2'], w['b2']]

    def batch_spec(shape):
        nd = len(shape)
        return pl.BlockSpec((TB,) + tuple(shape[1:]),
                            lambda b, l, _nd=nd: (b,) + (0,) * (_nd - 1))

    def const_spec(shape):
        nd = len(shape)
        return pl.BlockSpec(tuple(shape), lambda b, l, _nd=nd: (0,) * _nd)

    def layer_spec(shape):
        # (L, ...) stacked per-layer weights: layer l's slab, double-buffered by
        # the pipeline so layer l+1's weight DMA overlaps layer l compute.
        nd = len(shape)
        return pl.BlockSpec((1,) + tuple(shape[1:]),
                            lambda b, l, _nd=nd: (l,) + (0,) * (_nd - 1))

    in_specs = ([batch_spec(x_in.shape), batch_spec(mask_bias.shape)]
                + [const_spec(a.shape) for a in args[2:7]]
                + [layer_spec(a.shape) for a in args[7:]])

    # Scoped-VMEM sizing: always set it (v5e default is 16 MiB), cap well below
    # v7x's 64 MiB physical VMEM.
    w_layer_bytes = 2 * (3 * H * H + H * H + 2 * H * Mlp)              # bf16
    act_bytes = 4 * (5 * TB * S * H + TB * S * 3 * H + TB * S * Mlp)   # f32 temps
    est = 2 * w_layer_bytes + act_bytes + (6 << 20)
    vmem_limit = int(min(max(est, 32 << 20), 46 << 20))
    # TODO(synk): if double-buffered per-layer weights ever exceed the 46 MiB cap
    # (very large H on v7x), split w1/w2 along the Mlp dim with a third grid axis.

    flops = int(2 * Bp * S * L * (4 * H * H + 2 * H * Mlp) + 4 * Bp * L * S * S * H)
    transc = int(Bp * L * (nh * S * S + S * Mlp))
    bytes_acc = int((Bp // TB) * L * w_layer_bytes + 2 * Bp * S * H * 4 + Bp * S * 4)

    kern = functools.partial(tower_kernel, num_heads=nh)
    out = pl.pallas_call(
        kern,
        out_shape=jax.ShapeDtypeStruct((Bp, S, H), jnp.float32),
        grid_spec=pltpu.PrefetchScalarGridSpec(
            num_scalar_prefetch=0,
            grid=(Bp // TB, L),
            in_specs=in_specs,
            out_specs=pl.BlockSpec((TB, S, H), lambda b, l: (b, 0, 0)),
            scratch_shapes=[pltpu.VMEM((TB, S, H), jnp.float32)],
        ),
        compiler_params=pltpu.CompilerParams(
            dimension_semantics=("parallel", "arbitrary"),
            vmem_limit_bytes=vmem_limit),
        cost_estimate=pl.CostEstimate(flops=flops, transcendentals=transc,
                                      bytes_accessed=bytes_acc),
    )(*args)

    return out[:B, :S0]


# --------------------------- deterministic params ------------------------------
def init_params(key, cfg):
    H = cfg['hidden_size']
    V = cfg['vocab_size']
    L = cfg['num_layers']
    mlp = cfg['mlp_ratio'] * H
    maxlen = cfg['max_text_len']

    def nrm(k, shape, std=0.02):
        return std * jax.random.normal(k, shape, jnp.float32)

    keys = iter(jax.random.split(key, 8 + 8 * L))
    p = {
        'word_emb': nrm(next(keys), (V, H)),
        'pos_emb': nrm(next(keys), (maxlen, H)),
        'bert_ttype_emb': nrm(next(keys), (2, H)),
        'emb_ln_g': jnp.ones((H,), jnp.float32),
        'emb_ln_b': jnp.zeros((H,), jnp.float32),
        'extra_ttype_emb': nrm(next(keys), (2, H)),
        'final_ln_g': jnp.ones((H,), jnp.float32),
        'final_ln_b': jnp.zeros((H,), jnp.float32),
        'blocks': [],
    }
    for _ in range(L):
        p['blocks'].append({
            'ln1_g': jnp.ones((H,), jnp.float32), 'ln1_b': jnp.zeros((H,), jnp.float32),
            'qkv_w': nrm(next(keys), (3 * H, H)), 'qkv_b': nrm(next(keys), (3 * H,)),
            'proj_w': nrm(next(keys), (H, H)), 'proj_b': nrm(next(keys), (H,)),
            'ln2_g': jnp.ones((H,), jnp.float32), 'ln2_b': jnp.zeros((H,), jnp.float32),
            'fc1_w': nrm(next(keys), (mlp, H)), 'fc1_b': nrm(next(keys), (mlp,)),
            'fc2_w': nrm(next(keys), (H, mlp)), 'fc2_b': nrm(next(keys), (H,)),
        })
    return p


# ----------------------------------- main --------------------------------------
if __name__ == "__main__":
    cfg = dict(vocab_size=100, hidden_size=32, num_layers=2, num_heads=4,
               mlp_ratio=4, max_text_len=16, drop_rate=0.0)  # dropout identity (eval)
    B, S = 2, 8

    key = jax.random.PRNGKey(0)
    kp, kid = jax.random.split(key)
    params = init_params(kp, cfg)

    text_ids = jax.random.randint(kid, (B, S), 0, cfg['vocab_size'], dtype=jnp.int32)
    text_masks = jnp.array([[1] * S, [1] * 5 + [0] * (S - 5)], dtype=jnp.int32)

    feats = text_feature_extractor(text_ids, text_masks, params, cfg)
    feats = jax.block_until_ready(feats)

    assert feats.shape == (B, S, cfg['hidden_size'])
    assert bool(jnp.all(jnp.isfinite(feats)))
    print("KERNEL_OK")
</pallas_src>

<mosaic_0001>
module attributes {stable_mosaic.version = 11 : i64} {
  func.func @tower_kernel(%arg0: i32, %arg1: i32, %arg2: memref<2x8x32xf32, #tpu.memory_space<vmem>>, %arg3: memref<2x1x8xf32, #tpu.memory_space<vmem>>, %arg4: memref<1x32xf32, #tpu.memory_space<vmem>>, %arg5: memref<1x32xf32, #tpu.memory_space<vmem>>, %arg6: memref<1x32xf32, #tpu.memory_space<vmem>>, %arg7: memref<1x32xf32, #tpu.memory_space<vmem>>, %arg8: memref<1x32xf32, #tpu.memory_space<vmem>>, %arg9: memref<1x1x32xf32, #tpu.memory_space<vmem>>, %arg10: memref<1x1x32xf32, #tpu.memory_space<vmem>>, %arg11: memref<1x32x96xbf16, #tpu.memory_space<vmem>>, %arg12: memref<1x1x96xf32, #tpu.memory_space<vmem>>, %arg13: memref<1x32x32xbf16, #tpu.memory_space<vmem>>, %arg14: memref<1x1x32xf32, #tpu.memory_space<vmem>>, %arg15: memref<1x1x32xf32, #tpu.memory_space<vmem>>, %arg16: memref<1x1x32xf32, #tpu.memory_space<vmem>>, %arg17: memref<1x32x128xbf16, #tpu.memory_space<vmem>>, %arg18: memref<1x1x128xf32, #tpu.memory_space<vmem>>, %arg19: memref<1x128x32xbf16, #tpu.memory_space<vmem>>, %arg20: memref<1x1x32xf32, #tpu.memory_space<vmem>>, %arg21: memref<2x8x32xf32, #tpu.memory_space<vmem>>, %arg22: memref<2x8x32xf32, #tpu.memory_space<vmem>>) attributes {dimension_semantics = [#tpu.dimension_semantics<parallel>, #tpu.dimension_semantics<arbitrary>], iteration_bounds = array<i64: 1, 2>, scalar_prefetch = 0 : i64, scratch_operands = 1 : i64, tpu.core_type = #tpu.core_type<tc>, window_params = [{transform_indices = @transform_0, window_bounds = array<i64: 2, 8, 32>}, {transform_indices = @transform_1, window_bounds = array<i64: 2, 1, 8>}, {pipeline_mode = #tpu.pipeline_mode<synchronous>, transform_indices = @transform_2, window_bounds = array<i64: 1, 32>}, {pipeline_mode = #tpu.pipeline_mode<synchronous>, transform_indices = @transform_3, window_bounds = array<i64: 1, 32>}, {pipeline_mode = #tpu.pipeline_mode<synchronous>, transform_indices = @transform_4, window_bounds = array<i64: 1, 32>}, {pipeline_mode = #tpu.pipeline_mode<synchronous>, transform_indices = @transform_5, window_bounds = array<i64: 1, 32>}, {pipeline_mode = #tpu.pipeline_mode<synchronous>, transform_indices = @transform_6, window_bounds = array<i64: 1, 32>}, {transform_indices = @transform_7, window_bounds = array<i64: 1, 1, 32>}, {transform_indices = @transform_8, window_bounds = array<i64: 1, 1, 32>}, {transform_indices = @transform_9, window_bounds = array<i64: 1, 32, 96>}, {transform_indices = @transform_10, window_bounds = array<i64: 1, 1, 96>}, {transform_indices = @transform_11, window_bounds = array<i64: 1, 32, 32>}, {transform_indices = @transform_12, window_bounds = array<i64: 1, 1, 32>}, {transform_indices = @transform_13, window_bounds = array<i64: 1, 1, 32>}, {transform_indices = @transform_14, window_bounds = array<i64: 1, 1, 32>}, {transform_indices = @transform_15, window_bounds = array<i64: 1, 32, 128>}, {transform_indices = @transform_16, window_bounds = array<i64: 1, 1, 128>}, {transform_indices = @transform_17, window_bounds = array<i64: 1, 128, 32>}, {transform_indices = @transform_18, window_bounds = array<i64: 1, 1, 32>}, {transform_indices = @transform_19, window_bounds = array<i64: 2, 8, 32>}]} {
    %c0_i32 = arith.constant 0 : i32
    %0 = arith.cmpi eq, %arg1, %c0_i32 : i32
    %1 = arith.extui %0 : i1 to i32
    %c0_i32_0 = arith.constant 0 : i32
    %2 = arith.cmpi ne, %1, %c0_i32_0 : i32
    scf.if %2 {
      %c0_94 = arith.constant 0 : index
      %c0_95 = arith.constant 0 : index
      %c0_96 = arith.constant 0 : index
      %236 = vector.load %arg2[%c0_94, %c0_95, %c0_96] : memref<2x8x32xf32, #tpu.memory_space<vmem>>, vector<2x8x32xf32>
      %c0_97 = arith.constant 0 : index
      %c0_98 = arith.constant 0 : index
      %237 = vector.load %arg4[%c0_97, %c0_98] : memref<1x32xf32, #tpu.memory_space<vmem>>, vector<1x32xf32>
      %c0_99 = arith.constant 0 : index
      %c0_100 = arith.constant 0 : index
      %238 = vector.load %arg5[%c0_99, %c0_100] : memref<1x32xf32, #tpu.memory_space<vmem>>, vector<1x32xf32>
      %cst_101 = arith.constant dense<0.000000e+00> : vector<2x8xf32>
      %239 = vector.multi_reduction <add>, %236, %cst_101 [2] : vector<2x8x32xf32> to vector<2x8xf32>
      %240 = vector.shape_cast %239 : vector<2x8xf32> to vector<2x8x1xf32>
      %cst_102 = arith.constant 3.200000e+01 : f32
      %241 = vector.broadcast %cst_102 : f32 to vector<2x8x1xf32>
      %242 = arith.divf %240, %241 : vector<2x8x1xf32>
      %243 = vector.broadcast %242 : vector<2x8x1xf32> to vector<2x8x32xf32>
      %244 = arith.subf %236, %243 : vector<2x8x32xf32>
      %245 = arith.mulf %244, %244 : vector<2x8x32xf32>
      %cst_103 = arith.constant dense<0.000000e+00> : vector<2x8xf32>
      %246 = vector.multi_reduction <add>, %245, %cst_103 [2] : vector<2x8x32xf32> to vector<2x8xf32>
      %247 = vector.shape_cast %246 : vector<2x8xf32> to vector<2x8x1xf32>
      %cst_104 = arith.constant 3.200000e+01 : f32
      %248 = vector.broadcast %cst_104 : f32 to vector<2x8x1xf32>
      %249 = arith.divf %247, %248 : vector<2x8x1xf32>
      %250 = vector.broadcast %242 : vector<2x8x1xf32> to vector<2x8x32xf32>
      %251 = arith.subf %236, %250 : vector<2x8x32xf32>
      %cst_105 = arith.constant 9.99999996E-13 : f32
      %252 = vector.broadcast %cst_105 : f32 to vector<2x8x1xf32>
      %253 = arith.addf %249, %252 : vector<2x8x1xf32>
      %254 = math.rsqrt %253 : vector<2x8x1xf32>
      %255 = vector.broadcast %254 : vector<2x8x1xf32> to vector<2x8x32xf32>
      %256 = arith.mulf %251, %255 : vector<2x8x32xf32>
      %257 = vector.shape_cast %237 : vector<1x32xf32> to vector<1x1x32xf32>
      %258 = vector.broadcast %257 : vector<1x1x32xf32> to vector<2x8x32xf32>
      %259 = arith.mulf %256, %258 : vector<2x8x32xf32>
      %260 = vector.shape_cast %238 : vector<1x32xf32> to vector<1x1x32xf32>
      %261 = vector.broadcast %260 : vector<1x1x32xf32> to vector<2x8x32xf32>
      %262 = arith.addf %259, %261 : vector<2x8x32xf32>
      %c0_106 = arith.constant 0 : index
      %c0_107 = arith.constant 0 : index
      %263 = vector.load %arg6[%c0_106, %c0_107] : memref<1x32xf32, #tpu.memory_space<vmem>>, vector<1x32xf32>
      %264 = vector.shape_cast %263 : vector<1x32xf32> to vector<1x1x32xf32>
      %265 = vector.broadcast %264 : vector<1x1x32xf32> to vector<2x8x32xf32>
      %266 = arith.addf %262, %265 : vector<2x8x32xf32>
      %c0_108 = arith.constant 0 : index
      %c0_109 = arith.constant 0 : index
      %c0_110 = arith.constant 0 : index
      %267 = vector.load %arg22[%c0_108, %c0_109, %c0_110] : memref<2x8x32xf32, #tpu.memory_space<vmem>>, vector<2x8x32xf32>
      tpu.vector_store %arg22[%c0_108, %c0_109, %c0_110], %266 {strides = array<i32>} : memref<2x8x32xf32, #tpu.memory_space<vmem>>, vector<2x8x32xf32>,
    } else {
    }
    %c0 = arith.constant 0 : index
    %c0_1 = arith.constant 0 : index
    %c0_2 = arith.constant 0 : index
    %3 = vector.load %arg22[%c0, %c0_1, %c0_2] : memref<2x8x32xf32, #tpu.memory_space<vmem>>, vector<2x8x32xf32>
    %c0_3 = arith.constant 0 : index
    %c0_4 = arith.constant 0 : index
    %c0_5 = arith.constant 0 : index
    %4 = vector.load %arg9[%c0_3, %c0_4, %c0_5] : memref<1x1x32xf32, #tpu.memory_space<vmem>>, vector<1x1x32xf32>
    %5 = vector.shape_cast %4 : vector<1x1x32xf32> to vector<1x32xf32>
    %c0_6 = arith.constant 0 : index
    %c0_7 = arith.constant 0 : index
    %c0_8 = arith.constant 0 : index
    %6 = vector.load %arg10[%c0_6, %c0_7, %c0_8] : memref<1x1x32xf32, #tpu.memory_space<vmem>>, vector<1x1x32xf32>
    %7 = vector.shape_cast %6 : vector<1x1x32xf32> to vector<1x32xf32>
    %cst = arith.constant dense<0.000000e+00> : vector<2x8xf32>
    %8 = vector.multi_reduction <add>, %3, %cst [2] : vector<2x8x32xf32> to vector<2x8xf32>
    %9 = vector.shape_cast %8 : vector<2x8xf32> to vector<2x8x1xf32>
    %cst_9 = arith.constant 3.200000e+01 : f32
    %10 = vector.broadcast %cst_9 : f32 to vector<2x8x1xf32>
    %11 = arith.divf %9, %10 : vector<2x8x1xf32>
    %12 = vector.broadcast %11 : vector<2x8x1xf32> to vector<2x8x32xf32>
    %13 = arith.subf %3, %12 : vector<2x8x32xf32>
    %14 = arith.mulf %13, %13 : vector<2x8x32xf32>
    %cst_10 = arith.constant dense<0.000000e+00> : vector<2x8xf32>
    %15 = vector.multi_reduction <add>, %14, %cst_10 [2] : vector<2x8x32xf32> to vector<2x8xf32>
    %16 = vector.shape_cast %15 : vector<2x8xf32> to vector<2x8x1xf32>
    %cst_11 = arith.constant 3.200000e+01 : f32
    %17 = vector.broadcast %cst_11 : f32 to vector<2x8x1xf32>
    %18 = arith.divf %16, %17 : vector<2x8x1xf32>
    %19 = vector.broadcast %11 : vector<2x8x1xf32> to vector<2x8x32xf32>
    %20 = arith.subf %3, %19 : vector<2x8x32xf32>
    %cst_12 = arith.constant 9.99999997E-7 : f32
    %21 = vector.broadcast %cst_12 : f32 to vector<2x8x1xf32>
    %22 = arith.addf %18, %21 : vector<2x8x1xf32>
    %23 = math.rsqrt %22 : vector<2x8x1xf32>
    %24 = vector.broadcast %23 : vector<2x8x1xf32> to vector<2x8x32xf32>
    %25 = arith.mulf %20, %24 : vector<2x8x32xf32>
    %26 = vector.shape_cast %5 : vector<1x32xf32> to vector<1x1x32xf32>
    %27 = vector.broadcast %26 : vector<1x1x32xf32> to vector<2x8x32xf32>
    %28 = arith.mulf %25, %27 : vector<2x8x32xf32>
    %29 = vector.shape_cast %7 : vector<1x32xf32> to vector<1x1x32xf32>
    %30 = vector.broadcast %29 : vector<1x1x32xf32> to vector<2x8x32xf32>
    %31 = arith.addf %28, %30 : vector<2x8x32xf32>
    %32 = vector.shape_cast %31 : vector<2x8x32xf32> to vector<16x32xf32>
    %33 = arith.truncf %32 : vector<16x32xf32> to vector<16x32xbf16>
    %c0_13 = arith.constant 0 : index
    %c0_14 = arith.constant 0 : index
    %c0_15 = arith.constant 0 : index
    %34 = vector.load %arg11[%c0_13, %c0_14, %c0_15] : memref<1x32x96xbf16, #tpu.memory_space<vmem>>, vector<1x32x96xbf16>
    %35 = vector.shape_cast %34 : vector<1x32x96xbf16> to vector<32x96xbf16>
    %cst_16 = arith.constant dense<0.000000e+00> : vector<16x96xf32>
    %36 = tpu.matmul %33, %35, %cst_16 {dimension_numbers = #tpu.dot_dimension_numbers<[1], [0], [0], [1], [0, 0, 1, 1], [], []>} : vector<16x32xbf16>, vector<32x96xbf16>, vector<16x96xf32> -> vector<16x96xf32>
    %c0_17 = arith.constant 0 : index
    %c0_18 = arith.constant 0 : index
    %c0_19 = arith.constant 0 : index
    %37 = vector.load %arg12[%c0_17, %c0_18, %c0_19] : memref<1x1x96xf32, #tpu.memory_space<vmem>>, vector<1x1x96xf32>
    %38 = vector.shape_cast %37 : vector<1x1x96xf32> to vector<1x96xf32>
    %39 = vector.broadcast %38 : vector<1x96xf32> to vector<16x96xf32>
    %40 = arith.addf %36, %39 : vector<16x96xf32>
    %41 = vector.shape_cast %40 : vector<16x96xf32> to vector<2x8x96xf32>
    %c0_20 = arith.constant 0 : index
    %c0_21 = arith.constant 0 : index
    %c0_22 = arith.constant 0 : index
    %42 = vector.load %arg3[%c0_20, %c0_21, %c0_22] : memref<2x1x8xf32, #tpu.memory_space<vmem>>, vector<2x1x8xf32>
    %43 = vector.shape_cast %42 : vector<2x1x8xf32> to vector<2x1x8xf32>
    %44 = vector.broadcast %43 : vector<2x1x8xf32> to vector<2x8x8xf32>
    %45 = vector.extract_strided_slice %41 {offsets = [0, 0, 0], sizes = [2, 8, 8], strides = [1, 1, 1]} : vector<2x8x96xf32> to vector<2x8x8xf32>
    %46 = arith.truncf %45 : vector<2x8x8xf32> to vector<2x8x8xbf16>
    %47 = vector.extract_strided_slice %41 {offsets = [0, 0, 32], sizes = [2, 8, 8], strides = [1, 1, 1]} : vector<2x8x96xf32> to vector<2x8x8xf32>
    %48 = arith.truncf %47 : vector<2x8x8xf32> to vector<2x8x8xbf16>
    %49 = vector.extract_strided_slice %41 {offsets = [0, 0, 64], sizes = [2, 8, 8], strides = [1, 1, 1]} : vector<2x8x96xf32> to vector<2x8x8xf32>
    %50 = arith.truncf %49 : vector<2x8x8xf32> to vector<2x8x8xbf16>
    "tpu.trace_start"() <{level = 10 : i32, message = "bqd,bkd->bqk"}> : () -> ()
    %cst_23 = arith.constant dense<0.000000e+00> : vector<2x8x8xf32>
    %51 = tpu.matmul %46, %48, %cst_23 {dimension_numbers = #tpu.dot_dimension_numbers<[2], [2], [1], [1], [0, 0, 0, 1, 1, 1], [0], [0]>} : vector<2x8x8xbf16>, vector<2x8x8xbf16>, vector<2x8x8xf32> -> vector<2x8x8xf32>
    "tpu.trace_stop"() : () -> ()
    %cst_24 = arith.constant 0.353553385 : f32
    %52 = vector.broadcast %cst_24 : f32 to vector<2x8x8xf32>
    %53 = arith.mulf %51, %52 : vector<2x8x8xf32>
    %54 = arith.addf %53, %44 : vector<2x8x8xf32>
    %cst_25 = arith.constant dense<0xFF800000> : vector<2x8xf32>
    %55 = vector.multi_reduction <maximumf>, %54, %cst_25 [2] : vector<2x8x8xf32> to vector<2x8xf32>
    %56 = vector.shape_cast %55 : vector<2x8xf32> to vector<2x8x1xf32>
    %57 = vector.broadcast %56 : vector<2x8x1xf32> to vector<2x8x8xf32>
    %58 = arith.subf %54, %57 : vector<2x8x8xf32>
    %59 = math.exp %58 : vector<2x8x8xf32>
    %cst_26 = arith.constant dense<0.000000e+00> : vector<2x8xf32>
    %60 = vector.multi_reduction <add>, %59, %cst_26 [2] : vector<2x8x8xf32> to vector<2x8xf32>
    %61 = vector.shape_cast %60 : vector<2x8xf32> to vector<2x8x1xf32>
    %62 = tpu.reciprocal %61 {approx = true} : vector<2x8x1xf32> -> vector<2x8x1xf32>
    %63 = vector.broadcast %62 : vector<2x8x1xf32> to vector<2x8x8xf32>
    %64 = arith.mulf %59, %63 : vector<2x8x8xf32>
    %65 = arith.truncf %64 : vector<2x8x8xf32> to vector<2x8x8xbf16>
    "tpu.trace_start"() <{level = 10 : i32, message = "bqk,bkd->bqd"}> : () -> ()
    %cst_27 = arith.constant dense<0.000000e+00> : vector<2x8x8xf32>
    %66 = tpu.matmul %65, %50, %cst_27 {dimension_numbers = #tpu.dot_dimension_numbers<[2], [1], [1], [2], [0, 0, 0, 1, 1, 2], [0], [0]>} : vector<2x8x8xbf16>, vector<2x8x8xbf16>, vector<2x8x8xf32> -> vector<2x8x8xf32>
    "tpu.trace_stop"() : () -> ()
    %67 = vector.extract_strided_slice %41 {offsets = [0, 0, 8], sizes = [2, 8, 8], strides = [1, 1, 1]} : vector<2x8x96xf32> to vector<2x8x8xf32>
    %68 = arith.truncf %67 : vector<2x8x8xf32> to vector<2x8x8xbf16>
    %69 = vector.extract_strided_slice %41 {offsets = [0, 0, 40], sizes = [2, 8, 8], strides = [1, 1, 1]} : vector<2x8x96xf32> to vector<2x8x8xf32>
    %70 = arith.truncf %69 : vector<2x8x8xf32> to vector<2x8x8xbf16>
    %71 = vector.extract_strided_slice %41 {offsets = [0, 0, 72], sizes = [2, 8, 8], strides = [1, 1, 1]} : vector<2x8x96xf32> to vector<2x8x8xf32>
    %72 = arith.truncf %71 : vector<2x8x8xf32> to vector<2x8x8xbf16>
    "tpu.trace_start"() <{level = 10 : i32, message = "bqd,bkd->bqk"}> : () -> ()
    %cst_28 = arith.constant dense<0.000000e+00> : vector<2x8x8xf32>
    %73 = tpu.matmul %68, %70, %cst_28 {dimension_numbers = #tpu.dot_dimension_numbers<[2], [2], [1], [1], [0, 0, 0, 1, 1, 1], [0], [0]>} : vector<2x8x8xbf16>, vector<2x8x8xbf16>, vector<2x8x8xf32> -> vector<2x8x8xf32>
    "tpu.trace_stop"() : () -> ()
    %cst_29 = arith.constant 0.353553385 : f32
    %74 = vector.broadcast %cst_29 : f32 to vector<2x8x8xf32>
    %75 = arith.mulf %73, %74 : vector<2x8x8xf32>
    %76 = arith.addf %75, %44 : vector<2x8x8xf32>
    %cst_30 = arith.constant dense<0xFF800000> : vector<2x8xf32>
    %77 = vector.multi_reduction <maximumf>, %76, %cst_30 [2] : vector<2x8x8xf32> to vector<2x8xf32>
    %78 = vector.shape_cast %77 : vector<2x8xf32> to vector<2x8x1xf32>
    %79 = vector.broadcast %78 : vector<2x8x1xf32> to vector<2x8x8xf32>
    %80 = arith.subf %76, %79 : vector<2x8x8xf32>
    %81 = math.exp %80 : vector<2x8x8xf32>
    %cst_31 = arith.constant dense<0.000000e+00> : vector<2x8xf32>
    %82 = vector.multi_reduction <add>, %81, %cst_31 [2] : vector<2x8x8xf32> to vector<2x8xf32>
    %83 = vector.shape_cast %82 : vector<2x8xf32> to vector<2x8x1xf32>
    %84 = tpu.reciprocal %83 {approx = true} : vector<2x8x1xf32> -> vector<2x8x1xf32>
    %85 = vector.broadcast %84 : vector<2x8x1xf32> to vector<2x8x8xf32>
    %86 = arith.mulf %81, %85 : vector<2x8x8xf32>
    %87 = arith.truncf %86 : vector<2x8x8xf32> to vector<2x8x8xbf16>
    "tpu.trace_start"() <{level = 10 : i32, message = "bqk,bkd->bqd"}> : () -> ()
    %cst_32 = arith.constant dense<0.000000e+00> : vector<2x8x8xf32>
    %88 = tpu.matmul %87, %72, %cst_32 {dimension_numbers = #tpu.dot_dimension_numbers<[2], [1], [1], [2], [0, 0, 0, 1, 1, 2], [0], [0]>} : vector<2x8x8xbf16>, vector<2x8x8xbf16>, vector<2x8x8xf32> -> vector<2x8x8xf32>
    "tpu.trace_stop"() : () -> ()
    %89 = vector.extract_strided_slice %41 {offsets = [0, 0, 16], sizes = [2, 8, 8], strides = [1, 1, 1]} : vector<2x8x96xf32> to vector<2x8x8xf32>
    %90 = arith.truncf %89 : vector<2x8x8xf32> to vector<2x8x8xbf16>
    %91 = vector.extract_strided_slice %41 {offsets = [0, 0, 48], sizes = [2, 8, 8], strides = [1, 1, 1]} : vector<2x8x96xf32> to vector<2x8x8xf32>
    %92 = arith.truncf %91 : vector<2x8x8xf32> to vector<2x8x8xbf16>
    %93 = vector.extract_strided_slice %41 {offsets = [0, 0, 80], sizes = [2, 8, 8], strides = [1, 1, 1]} : vector<2x8x96xf32> to vector<2x8x8xf32>
    %94 = arith.truncf %93 : vector<2x8x8xf32> to vector<2x8x8xbf16>
    "tpu.trace_start"() <{level = 10 : i32, message = "bqd,bkd->bqk"}> : () -> ()
    %cst_33 = arith.constant dense<0.000000e+00> : vector<2x8x8xf32>
    %95 = tpu.matmul %90, %92, %cst_33 {dimension_numbers = #tpu.dot_dimension_numbers<[2], [2], [1], [1], [0, 0, 0, 1, 1, 1], [0], [0]>} : vector<2x8x8xbf16>, vector<2x8x8xbf16>, vector<2x8x8xf32> -> vector<2x8x8xf32>
    "tpu.trace_stop"() : () -> ()
    %cst_34 = arith.constant 0.353553385 : f32
    %96 = vector.broadcast %cst_34 : f32 to vector<2x8x8xf32>
    %97 = arith.mulf %95, %96 : vector<2x8x8xf32>
    %98 = arith.addf %97, %44 : vector<2x8x8xf32>
    %cst_35 = arith.constant dense<0xFF800000> : vector<2x8xf32>
    %99 = vector.multi_reduction <maximumf>, %98, %cst_35 [2] : vector<2x8x8xf32> to vector<2x8xf32>
    %100 = vector.shape_cast %99 : vector<2x8xf32> to vector<2x8x1xf32>
    %101 = vector.broadcast %100 : vector<2x8x1xf32> to vector<2x8x8xf32>
    %102 = arith.subf %98, %101 : vector<2x8x8xf32>
    %103 = math.exp %102 : vector<2x8x8xf32>
    %cst_36 = arith.constant dense<0.000000e+00> : vector<2x8xf32>
    %104 = vector.multi_reduction <add>, %103, %cst_36 [2] : vector<2x8x8xf32> to vector<2x8xf32>
    %105 = vector.shape_cast %104 : vector<2x8xf32> to vector<2x8x1xf32>
    %106 = tpu.reciprocal %105 {approx = true} : vector<2x8x1xf32> -> vector<2x8x1xf32>
    %107 = vector.broadcast %106 : vector<2x8x1xf32> to vector<2x8x8xf32>
    %108 = arith.mulf %103, %107 : vector<2x8x8xf32>
    %109 = arith.truncf %108 : vector<2x8x8xf32> to vector<2x8x8xbf16>
    "tpu.trace_start"() <{level = 10 : i32, message = "bqk,bkd->bqd"}> : () -> ()
    %cst_37 = arith.constant dense<0.000000e+00> : vector<2x8x8xf32>
    %110 = tpu.matmul %109, %94, %cst_37 {dimension_numbers = #tpu.dot_dimension_numbers<[2], [1], [1], [2], [0, 0, 0, 1, 1, 2], [0], [0]>} : vector<2x8x8xbf16>, vector<2x8x8xbf16>, vector<2x8x8xf32> -> vector<2x8x8xf32>
    "tpu.trace_stop"() : () -> ()
    %111 = vector.extract_strided_slice %41 {offsets = [0, 0, 24], sizes = [2, 8, 8], strides = [1, 1, 1]} : vector<2x8x96xf32> to vector<2x8x8xf32>
    %112 = arith.truncf %111 : vector<2x8x8xf32> to vector<2x8x8xbf16>
    %113 = vector.extract_strided_slice %41 {offsets = [0, 0, 56], sizes = [2, 8, 8], strides = [1, 1, 1]} : vector<2x8x96xf32> to vector<2x8x8xf32>
    %114 = arith.truncf %113 : vector<2x8x8xf32> to vector<2x8x8xbf16>
    %115 = vector.extract_strided_slice %41 {offsets = [0, 0, 88], sizes = [2, 8, 8], strides = [1, 1, 1]} : vector<2x8x96xf32> to vector<2x8x8xf32>
    %116 = arith.truncf %115 : vector<2x8x8xf32> to vector<2x8x8xbf16>
    "tpu.trace_start"() <{level = 10 : i32, message = "bqd,bkd->bqk"}> : () -> ()
    %cst_38 = arith.constant dense<0.000000e+00> : vector<2x8x8xf32>
    %117 = tpu.matmul %112, %114, %cst_38 {dimension_numbers = #tpu.dot_dimension_numbers<[2], [2], [1], [1], [0, 0, 0, 1, 1, 1], [0], [0]>} : vector<2x8x8xbf16>, vector<2x8x8xbf16>, vector<2x8x8xf32> -> vector<2x8x8xf32>
    "tpu.trace_stop"() : () -> ()
    %cst_39 = arith.constant 0.353553385 : f32
    %118 = vector.broadcast %cst_39 : f32 to vector<2x8x8xf32>
    %119 = arith.mulf %117, %118 : vector<2x8x8xf32>
    %120 = arith.addf %119, %44 : vector<2x8x8xf32>
    %cst_40 = arith.constant dense<0xFF800000> : vector<2x8xf32>
    %121 = vector.multi_reduction <maximumf>, %120, %cst_40 [2] : vector<2x8x8xf32> to vector<2x8xf32>
    %122 = vector.shape_cast %121 : vector<2x8xf32> to vector<2x8x1xf32>
    %123 = vector.broadcast %122 : vector<2x8x1xf32> to vector<2x8x8xf32>
    %124 = arith.subf %120, %123 : vector<2x8x8xf32>
    %125 = math.exp %124 : vector<2x8x8xf32>
    %cst_41 = arith.constant dense<0.000000e+00> : vector<2x8xf32>
    %126 = vector.multi_reduction <add>, %125, %cst_41 [2] : vector<2x8x8xf32> to vector<2x8xf32>
    %127 = vector.shape_cast %126 : vector<2x8xf32> to vector<2x8x1xf32>
    %128 = tpu.reciprocal %127 {approx = true} : vector<2x8x1xf32> -> vector<2x8x1xf32>
    %129 = vector.broadcast %128 : vector<2x8x1xf32> to vector<2x8x8xf32>
    %130 = arith.mulf %125, %129 : vector<2x8x8xf32>
    %131 = arith.truncf %130 : vector<2x8x8xf32> to vector<2x8x8xbf16>
    "tpu.trace_start"() <{level = 10 : i32, message = "bqk,bkd->bqd"}> : () -> ()
    %cst_42 = arith.constant dense<0.000000e+00> : vector<2x8x8xf32>
    %132 = tpu.matmul %131, %116, %cst_42 {dimension_numbers = #tpu.dot_dimension_numbers<[2], [1], [1], [2], [0, 0, 0, 1, 1, 2], [0], [0]>} : vector<2x8x8xbf16>, vector<2x8x8xbf16>, vector<2x8x8xf32> -> vector<2x8x8xf32>
    "tpu.trace_stop"() : () -> ()
    %133 = tpu.concatenate %66, %88, %110, %132 in 2 : vector<2x8x8xf32>, vector<2x8x8xf32>, vector<2x8x8xf32>, vector<2x8x8xf32> -> vector<2x8x32xf32>
    %134 = vector.shape_cast %133 : vector<2x8x32xf32> to vector<16x32xf32>
    %135 = arith.truncf %134 : vector<16x32xf32> to vector<16x32xbf16>
    %c0_43 = arith.constant 0 : index
    %c0_44 = arith.constant 0 : index
    %c0_45 = arith.constant 0 : index
    %136 = vector.load %arg13[%c0_43, %c0_44, %c0_45] : memref<1x32x32xbf16, #tpu.memory_space<vmem>>, vector<1x32x32xbf16>
    %137 = vector.shape_cast %136 : vector<1x32x32xbf16> to vector<32x32xbf16>
    %cst_46 = arith.constant dense<0.000000e+00> : vector<16x32xf32>
    %138 = tpu.matmul %135, %137, %cst_46 {dimension_numbers = #tpu.dot_dimension_numbers<[1], [0], [0], [1], [0, 0, 1, 1], [], []>} : vector<16x32xbf16>, vector<32x32xbf16>, vector<16x32xf32> -> vector<16x32xf32>
    %c0_47 = arith.constant 0 : index
    %c0_48 = arith.constant 0 : index
    %c0_49 = arith.constant 0 : index
    %139 = vector.load %arg14[%c0_47, %c0_48, %c0_49] : memref<1x1x32xf32, #tpu.memory_space<vmem>>, vector<1x1x32xf32>
    %140 = vector.shape_cast %139 : vector<1x1x32xf32> to vector<1x32xf32>
    %141 = vector.broadcast %140 : vector<1x32xf32> to vector<16x32xf32>
    %142 = arith.addf %138, %141 : vector<16x32xf32>
    %143 = vector.shape_cast %142 : vector<16x32xf32> to vector<2x8x32xf32>
    %144 = arith.addf %3, %143 : vector<2x8x32xf32>
    %c0_50 = arith.constant 0 : index
    %c0_51 = arith.constant 0 : index
    %c0_52 = arith.constant 0 : index
    %145 = vector.load %arg15[%c0_50, %c0_51, %c0_52] : memref<1x1x32xf32, #tpu.memory_space<vmem>>, vector<1x1x32xf32>
    %146 = vector.shape_cast %145 : vector<1x1x32xf32> to vector<1x32xf32>
    %c0_53 = arith.constant 0 : index
    %c0_54 = arith.constant 0 : index
    %c0_55 = arith.constant 0 : index
    %147 = vector.load %arg16[%c0_53, %c0_54, %c0_55] : memref<1x1x32xf32, #tpu.memory_space<vmem>>, vector<1x1x32xf32>
    %148 = vector.shape_cast %147 : vector<1x1x32xf32> to vector<1x32xf32>
    %cst_56 = arith.constant dense<0.000000e+00> : vector<2x8xf32>
    %149 = vector.multi_reduction <add>, %144, %cst_56 [2] : vector<2x8x32xf32> to vector<2x8xf32>
    %150 = vector.shape_cast %149 : vector<2x8xf32> to vector<2x8x1xf32>
    %cst_57 = arith.constant 3.200000e+01 : f32
    %151 = vector.broadcast %cst_57 : f32 to vector<2x8x1xf32>
    %152 = arith.divf %150, %151 : vector<2x8x1xf32>
    %153 = vector.broadcast %152 : vector<2x8x1xf32> to vector<2x8x32xf32>
    %154 = arith.subf %144, %153 : vector<2x8x32xf32>
    %155 = arith.mulf %154, %154 : vector<2x8x32xf32>
    %cst_58 = arith.constant dense<0.000000e+00> : vector<2x8xf32>
    %156 = vector.multi_reduction <add>, %155, %cst_58 [2] : vector<2x8x32xf32> to vector<2x8xf32>
    %157 = vector.shape_cast %156 : vector<2x8xf32> to vector<2x8x1xf32>
    %cst_59 = arith.constant 3.200000e+01 : f32
    %158 = vector.broadcast %cst_59 : f32 to vector<2x8x1xf32>
    %159 = arith.divf %157, %158 : vector<2x8x1xf32>
    %160 = vector.broadcast %152 : vector<2x8x1xf32> to vector<2x8x32xf32>
    %161 = arith.subf %144, %160 : vector<2x8x32xf32>
    %cst_60 = arith.constant 9.99999997E-7 : f32
    %162 = vector.broadcast %cst_60 : f32 to vector<2x8x1xf32>
    %163 = arith.addf %159, %162 : vector<2x8x1xf32>
    %164 = math.rsqrt %163 : vector<2x8x1xf32>
    %165 = vector.broadcast %164 : vector<2x8x1xf32> to vector<2x8x32xf32>
    %166 = arith.mulf %161, %165 : vector<2x8x32xf32>
    %167 = vector.shape_cast %146 : vector<1x32xf32> to vector<1x1x32xf32>
    %168 = vector.broadcast %167 : vector<1x1x32xf32> to vector<2x8x32xf32>
    %169 = arith.mulf %166, %168 : vector<2x8x32xf32>
    %170 = vector.shape_cast %148 : vector<1x32xf32> to vector<1x1x32xf32>
    %171 = vector.broadcast %170 : vector<1x1x32xf32> to vector<2x8x32xf32>
    %172 = arith.addf %169, %171 : vector<2x8x32xf32>
    %173 = vector.shape_cast %172 : vector<2x8x32xf32> to vector<16x32xf32>
    %174 = arith.truncf %173 : vector<16x32xf32> to vector<16x32xbf16>
    %c0_61 = arith.constant 0 : index
    %c0_62 = arith.constant 0 : index
    %c0_63 = arith.constant 0 : index
    %175 = vector.load %arg17[%c0_61, %c0_62, %c0_63] : memref<1x32x128xbf16, #tpu.memory_space<vmem>>, vector<1x32x128xbf16>
    %176 = vector.shape_cast %175 : vector<1x32x128xbf16> to vector<32x128xbf16>
    %cst_64 = arith.constant dense<0.000000e+00> : vector<16x128xf32>
    %177 = tpu.matmul %174, %176, %cst_64 {dimension_numbers = #tpu.dot_dimension_numbers<[1], [0], [0], [1], [0, 0, 1, 1], [], []>} : vector<16x32xbf16>, vector<32x128xbf16>, vector<16x128xf32> -> vector<16x128xf32>
    %c0_65 = arith.constant 0 : index
    %c0_66 = arith.constant 0 : index
    %c0_67 = arith.constant 0 : index
    %178 = vector.load %arg18[%c0_65, %c0_66, %c0_67] : memref<1x1x128xf32, #tpu.memory_space<vmem>>, vector<1x1x128xf32>
    %179 = vector.shape_cast %178 : vector<1x1x128xf32> to vector<1x128xf32>
    %180 = vector.broadcast %179 : vector<1x128xf32> to vector<16x128xf32>
    %181 = arith.addf %177, %180 : vector<16x128xf32>
    %cst_68 = arith.constant 5.000000e-01 : f32
    %182 = vector.broadcast %cst_68 : f32 to vector<16x128xf32>
    %183 = arith.mulf %182, %181 : vector<16x128xf32>
    %cst_69 = arith.constant 0.707106769 : f32
    %184 = vector.broadcast %cst_69 : f32 to vector<16x128xf32>
    %185 = arith.mulf %181, %184 : vector<16x128xf32>
    %186 = math.absf %185 : vector<16x128xf32>
    %cst_70 = arith.constant 0.327591091 : f32
    %187 = vector.broadcast %cst_70 : f32 to vector<16x128xf32>
    %188 = arith.mulf %187, %186 : vector<16x128xf32>
    %cst_71 = arith.constant 1.000000e+00 : f32
    %189 = vector.broadcast %cst_71 : f32 to vector<16x128xf32>
    %190 = arith.addf %189, %188 : vector<16x128xf32>
    %cst_72 = arith.constant 1.000000e+00 : f32
    %191 = vector.broadcast %cst_72 : f32 to vector<16x128xf32>
    %192 = arith.divf %191, %190 : vector<16x128xf32>
    %cst_73 = arith.constant 1.06140542 : f32
    %193 = vector.broadcast %cst_73 : f32 to vector<16x128xf32>
    %194 = arith.mulf %193, %192 : vector<16x128xf32>
    %cst_74 = arith.constant -1.45315206 : f32
    %195 = vector.broadcast %cst_74 : f32 to vector<16x128xf32>
    %196 = arith.addf %194, %195 : vector<16x128xf32>
    %197 = arith.mulf %196, %192 : vector<16x128xf32>
    %cst_75 = arith.constant 1.42141378 : f32
    %198 = vector.broadcast %cst_75 : f32 to vector<16x128xf32>
    %199 = arith.addf %197, %198 : vector<16x128xf32>
    %200 = arith.mulf %199, %192 : vector<16x128xf32>
    %cst_76 = arith.constant -0.284496725 : f32
    %201 = vector.broadcast %cst_76 : f32 to vector<16x128xf32>
    %202 = arith.addf %200, %201 : vector<16x128xf32>
    %203 = arith.mulf %202, %192 : vector<16x128xf32>
    %cst_77 = arith.constant 0.254829586 : f32
    %204 = vector.broadcast %cst_77 : f32 to vector<16x128xf32>
    %205 = arith.addf %203, %204 : vector<16x128xf32>
    %206 = arith.mulf %205, %192 : vector<16x128xf32>
    %cst_78 = arith.constant 0.000000e+00 : f32
    %207 = vector.broadcast %cst_78 : f32 to vector<16x128xf32>
    %208 = arith.subf %207, %186 : vector<16x128xf32>
    %209 = arith.mulf %208, %186 : vector<16x128xf32>
    %210 = math.exp %209 : vector<16x128xf32>
    %211 = arith.mulf %206, %210 : vector<16x128xf32>
    %cst_79 = arith.constant 1.000000e+00 : f32
    %212 = vector.broadcast %cst_79 : f32 to vector<16x128xf32>
    %213 = arith.subf %212, %211 : vector<16x128xf32>
    %cst_80 = arith.constant 0.000000e+00 : f32
    %214 = vector.broadcast %cst_80 : f32 to vector<16x128xf32>
    %215 = arith.cmpf oge, %185, %214 : vector<16x128xf32>
    %cst_81 = arith.constant 0.000000e+00 : f32
    %216 = vector.broadcast %cst_81 : f32 to vector<16x128xf32>
    %217 = arith.subf %216, %213 : vector<16x128xf32>
    %218 = arith.select %215, %213, %217 : vector<16x128xi1>, vector<16x128xf32>
    %cst_82 = arith.constant 1.000000e+00 : f32
    %219 = vector.broadcast %cst_82 : f32 to vector<16x128xf32>
    %220 = arith.addf %219, %218 : vector<16x128xf32>
    %221 = arith.mulf %183, %220 : vector<16x128xf32>
    %222 = arith.truncf %221 : vector<16x128xf32> to vector<16x128xbf16>
    %c0_83 = arith.constant 0 : index
    %c0_84 = arith.constant 0 : index
    %c0_85 = arith.constant 0 : index
    %223 = vector.load %arg19[%c0_83, %c0_84, %c0_85] : memref<1x128x32xbf16, #tpu.memory_space<vmem>>, vector<1x128x32xbf16>
    %224 = vector.shape_cast %223 : vector<1x128x32xbf16> to vector<128x32xbf16>
    %cst_86 = arith.constant dense<0.000000e+00> : vector<16x32xf32>
    %225 = tpu.matmul %222, %224, %cst_86 {dimension_numbers = #tpu.dot_dimension_numbers<[1], [0], [0], [1], [0, 0, 1, 1], [], []>} : vector<16x128xbf16>, vector<128x32xbf16>, vector<16x32xf32> -> vector<16x32xf32>
    %c0_87 = arith.constant 0 : index
    %c0_88 = arith.constant 0 : index
    %c0_89 = arith.constant 0 : index
    %226 = vector.load %arg20[%c0_87, %c0_88, %c0_89] : memref<1x1x32xf32, #tpu.memory_space<vmem>>, vector<1x1x32xf32>
    %227 = vector.shape_cast %226 : vector<1x1x32xf32> to vector<1x32xf32>
    %228 = vector.broadcast %227 : vector<1x32xf32> to vector<16x32xf32>
    %229 = arith.addf %225, %228 : vector<16x32xf32>
    %230 = vector.shape_cast %229 : vector<16x32xf32> to vector<2x8x32xf32>
    %231 = arith.addf %144, %230 : vector<2x8x32xf32>
    %c0_90 = arith.constant 0 : index
    %c0_91 = arith.constant 0 : index
    %c0_92 = arith.constant 0 : index
    %232 = vector.load %arg22[%c0_90, %c0_91, %c0_92] : memref<2x8x32xf32, #tpu.memory_space<vmem>>, vector<2x8x32xf32>
    tpu.vector_store %arg22[%c0_90, %c0_91, %c0_92], %231 {strides = array<i32>} : memref<2x8x32xf32, #tpu.memory_space<vmem>>, vector<2x8x32xf32>,
    %c1_i32 = arith.constant 1 : i32
    %233 = arith.cmpi eq, %arg1, %c1_i32 : i32
    %234 = arith.extui %233 : i1 to i32
    %c0_i32_93 = arith.constant 0 : i32
    %235 = arith.cmpi ne, %234, %c0_i32_93 : i32
    scf.if %235 {
      %c0_94 = arith.constant 0 : index
      %c0_95 = arith.constant 0 : index
      %236 = vector.load %arg7[%c0_94, %c0_95] : memref<1x32xf32, #tpu.memory_space<vmem>>, vector<1x32xf32>
      %c0_96 = arith.constant 0 : index
      %c0_97 = arith.constant 0 : index
      %237 = vector.load %arg8[%c0_96, %c0_97] : memref<1x32xf32, #tpu.memory_space<vmem>>, vector<1x32xf32>
      %cst_98 = arith.constant dense<0.000000e+00> : vector<2x8xf32>
      %238 = vector.multi_reduction <add>, %231, %cst_98 [2] : vector<2x8x32xf32> to vector<2x8xf32>
      %239 = vector.shape_cast %238 : vector<2x8xf32> to vector<2x8x1xf32>
      %cst_99 = arith.constant 3.200000e+01 : f32
      %240 = vector.broadcast %cst_99 : f32 to vector<2x8x1xf32>
      %241 = arith.divf %239, %240 : vector<2x8x1xf32>
      %242 = vector.broadcast %241 : vector<2x8x1xf32> to vector<2x8x32xf32>
      %243 = arith.subf %231, %242 : vector<2x8x32xf32>
      %244 = arith.mulf %243, %243 : vector<2x8x32xf32>
      %cst_100 = arith.constant dense<0.000000e+00> : vector<2x8xf32>
      %245 = vector.multi_reduction <add>, %244, %cst_100 [2] : vector<2x8x32xf32> to vector<2x8xf32>
      %246 = vector.shape_cast %245 : vector<2x8xf32> to vector<2x8x1xf32>
      %cst_101 = arith.constant 3.200000e+01 : f32
      %247 = vector.broadcast %cst_101 : f32 to vector<2x8x1xf32>
      %248 = arith.divf %246, %247 : vector<2x8x1xf32>
      %249 = vector.broadcast %241 : vector<2x8x1xf32> to vector<2x8x32xf32>
      %250 = arith.subf %231, %249 : vector<2x8x32xf32>
      %cst_102 = arith.constant 9.99999997E-7 : f32
      %251 = vector.broadcast %cst_102 : f32 to vector<2x8x1xf32>
      %252 = arith.addf %248, %251 : vector<2x8x1xf32>
      %253 = math.rsqrt %252 : vector<2x8x1xf32>
      %254 = vector.broadcast %253 : vector<2x8x1xf32> to vector<2x8x32xf32>
      %255 = arith.mulf %250, %254 : vector<2x8x32xf32>
      %256 = vector.shape_cast %236 : vector<1x32xf32> to vector<1x1x32xf32>
      %257 = vector.broadcast %256 : vector<1x1x32xf32> to vector<2x8x32xf32>
      %258 = arith.mulf %255, %257 : vector<2x8x32xf32>
      %259 = vector.shape_cast %237 : vector<1x32xf32> to vector<1x1x32xf32>
      %260 = vector.broadcast %259 : vector<1x1x32xf32> to vector<2x8x32xf32>
      %261 = arith.addf %258, %260 : vector<2x8x32xf32>
      %c0_103 = arith.constant 0 : index
      %c0_104 = arith.constant 0 : index
      %c0_105 = arith.constant 0 : index
      %262 = vector.load %arg21[%c0_103, %c0_104, %c0_105] : memref<2x8x32xf32, #tpu.memory_space<vmem>>, vector<2x8x32xf32>
      tpu.vector_store %arg21[%c0_103, %c0_104, %c0_105], %261 {strides = array<i32>} : memref<2x8x32xf32, #tpu.memory_space<vmem>>, vector<2x8x32xf32>,
    } else {
    }
    return
  }
  func.func @transform_0(%arg0: i32, %arg1: i32) -> (i32, i32, i32) {
    %c0_i32 = arith.constant 0 : i32
    %c0_i32_0 = arith.constant 0 : i32
    %c0_i32_1 = arith.constant 0 : i32
    return %arg0, %c0_i32, %c0_i32_0 : i32, i32, i32
  }
  func.func @transform_1(%arg0: i32, %arg1: i32) -> (i32, i32, i32) {
    %c0_i32 = arith.constant 0 : i32
    %c0_i32_0 = arith.constant 0 : i32
    %c0_i32_1 = arith.constant 0 : i32
    return %arg0, %c0_i32, %c0_i32_0 : i32, i32, i32
  }
  func.func @transform_2(%arg0: i32, %arg1: i32) -> (i32, i32) {
    %c0_i32 = arith.constant 0 : i32
    %c0_i32_0 = arith.constant 0 : i32
    %c0_i32_1 = arith.constant 0 : i32
    return %c0_i32, %c0_i32_0 : i32, i32
  }
  func.func @transform_3(%arg0: i32, %arg1: i32) -> (i32, i32) {
    %c0_i32 = arith.constant 0 : i32
    %c0_i32_0 = arith.constant 0 : i32
    %c0_i32_1 = arith.constant 0 : i32
    return %c0_i32, %c0_i32_0 : i32, i32
  }
  func.func @transform_4(%arg0: i32, %arg1: i32) -> (i32, i32) {
    %c0_i32 = arith.constant 0 : i32
    %c0_i32_0 = arith.constant 0 : i32
    %c0_i32_1 = arith.constant 0 : i32
    return %c0_i32, %c0_i32_0 : i32, i32
  }
  func.func @transform_5(%arg0: i32, %arg1: i32) -> (i32, i32) {
    %c0_i32 = arith.constant 0 : i32
    %c0_i32_0 = arith.constant 0 : i32
    %c0_i32_1 = arith.constant 0 : i32
    return %c0_i32, %c0_i32_0 : i32, i32
  }
  func.func @transform_6(%arg0: i32, %arg1: i32) -> (i32, i32) {
    %c0_i32 = arith.constant 0 : i32
    %c0_i32_0 = arith.constant 0 : i32
    %c0_i32_1 = arith.constant 0 : i32
    return %c0_i32, %c0_i32_0 : i32, i32
  }
  func.func @transform_7(%arg0: i32, %arg1: i32) -> (i32, i32, i32) {
    %c0_i32 = arith.constant 0 : i32
    %c0_i32_0 = arith.constant 0 : i32
    %c0_i32_1 = arith.constant 0 : i32
    return %arg1, %c0_i32, %c0_i32_0 : i32, i32, i32
  }
  func.func @transform_8(%arg0: i32, %arg1: i32) -> (i32, i32, i32) {
    %c0_i32 = arith.constant 0 : i32
    %c0_i32_0 = arith.constant 0 : i32
    %c0_i32_1 = arith.constant 0 : i32
    return %arg1, %c0_i32, %c0_i32_0 : i32, i32, i32
  }
  func.func @transform_9(%arg0: i32, %arg1: i32) -> (i32, i32, i32) {
    %c0_i32 = arith.constant 0 : i32
    %c0_i32_0 = arith.constant 0 : i32
    %c0_i32_1 = arith.constant 0 : i32
    return %arg1, %c0_i32, %c0_i32_0 : i32, i32, i32
  }
  func.func @transform_10(%arg0: i32, %arg1: i32) -> (i32, i32, i32) {
    %c0_i32 = arith.constant 0 : i32
    %c0_i32_0 = arith.constant 0 : i32
    %c0_i32_1 = arith.constant 0 : i32
    return %arg1, %c0_i32, %c0_i32_0 : i32, i32, i32
  }
  func.func @transform_11(%arg0: i32, %arg1: i32) -> (i32, i32, i32) {
    %c0_i32 = arith.constant 0 : i32
    %c0_i32_0 = arith.constant 0 : i32
    %c0_i32_1 = arith.constant 0 : i32
    return %arg1, %c0_i32, %c0_i32_0 : i32, i32, i32
  }
  func.func @transform_12(%arg0: i32, %arg1: i32) -> (i32, i32, i32) {
    %c0_i32 = arith.constant 0 : i32
    %c0_i32_0 = arith.constant 0 : i32
    %c0_i32_1 = arith.constant 0 : i32
    return %arg1, %c0_i32, %c0_i32_0 : i32, i32, i32
  }
  func.func @transform_13(%arg0: i32, %arg1: i32) -> (i32, i32, i32) {
    %c0_i32 = arith.constant 0 : i32
    %c0_i32_0 = arith.constant 0 : i32
    %c0_i32_1 = arith.constant 0 : i32
    return %arg1, %c0_i32, %c0_i32_0 : i32, i32, i32
  }
  func.func @transform_14(%arg0: i32, %arg1: i32) -> (i32, i32, i32) {
    %c0_i32 = arith.constant 0 : i32
    %c0_i32_0 = arith.constant 0 : i32
    %c0_i32_1 = arith.constant 0 : i32
    return %arg1, %c0_i32, %c0_i32_0 : i32, i32, i32
  }
  func.func @transform_15(%arg0: i32, %arg1: i32) -> (i32, i32, i32) {
    %c0_i32 = arith.constant 0 : i32
    %c0_i32_0 = arith.constant 0 : i32
    %c0_i32_1 = arith.constant 0 : i32
    return %arg1, %c0_i32, %c0_i32_0 : i32, i32, i32
  }
  func.func @transform_16(%arg0: i32, %arg1: i32) -> (i32, i32, i32) {
    %c0_i32 = arith.constant 0 : i32
    %c0_i32_0 = arith.constant 0 : i32
    %c0_i32_1 = arith.constant 0 : i32
    return %arg1, %c0_i32, %c0_i32_0 : i32, i32, i32
  }
  func.func @transform_17(%arg0: i32, %arg1: i32) -> (i32, i32, i32) {
    %c0_i32 = arith.constant 0 : i32
    %c0_i32_0 = arith.constant 0 : i32
    %c0_i32_1 = arith.constant 0 : i32
    return %arg1, %c0_i32, %c0_i32_0 : i32, i32, i32
  }
  func.func @transform_18(%arg0: i32, %arg1: i32) -> (i32, i32, i32) {
    %c0_i32 = arith.constant 0 : i32
    %c0_i32_0 = arith.constant 0 : i32
    %c0_i32_1 = arith.constant 0 : i32
    return %arg1, %c0_i32, %c0_i32_0 : i32, i32, i32
  }
  func.func @transform_19(%arg0: i32, %arg1: i32) -> (i32, i32, i32) {
    %c0_i32 = arith.constant 0 : i32
    %c0_i32_0 = arith.constant 0 : i32
    %c0_i32_1 = arith.constant 0 : i32
    return %arg0, %c0_i32, %c0_i32_0 : i32, i32, i32
  }
}

</mosaic_0001>

<llo_original>
// kernel: tpu_custom_call.1
$region0: #{tpu_custom_call.1}
  #allocation0 [shape = 'u32[]', space=smem, size = 0x4, offset = 0x4, fixed_abs, tag = 'smem constant byte address 0x4 - core index']
  #allocation1 [shape = 'u32[72,128]{1,0:T(1,128)}', space=vmem, size = 0x9000, scoped, tag = 'internal scratch']
  #allocation2 [shape = 'f32[2,8,32]{2,1,0:T(8,128)}', space=vmem, size = 0x2000, scoped, tag = 'scratch operand']
  %s0 = inlined_call_operand.vmem [shape: f32[2,8,32], index: 0, kind: input, shape index: {}]
  %s1 = inlined_call_operand.vmem [shape: f32[2,1,8], index: 1, kind: input, shape index: {}]
  %s2 = inlined_call_operand.vmem [shape: f32[1,32], index: 2, kind: input, shape index: {}]
  %s3 = inlined_call_operand.vmem [shape: f32[1,32], index: 3, kind: input, shape index: {}]
  %s4 = inlined_call_operand.vmem [shape: f32[1,32], index: 4, kind: input, shape index: {}]
  %s5 = inlined_call_operand.vmem [shape: f32[1,32], index: 5, kind: input, shape index: {}]
  %s6 = inlined_call_operand.vmem [shape: f32[1,32], index: 6, kind: input, shape index: {}]
  %s7 = inlined_call_operand.vmem [shape: f32[2,1,32], index: 7, kind: input, shape index: {}]
  %s8 = inlined_call_operand.vmem [shape: f32[2,1,32], index: 8, kind: input, shape index: {}]
  %s9 = inlined_call_operand.vmem [shape: bf16[2,32,96], index: 9, kind: input, shape index: {}]
  %s10 = inlined_call_operand.vmem [shape: f32[2,1,96], index: 10, kind: input, shape index: {}]
  %s11 = inlined_call_operand.vmem [shape: bf16[2,32,32], index: 11, kind: input, shape index: {}]
  %s12 = inlined_call_operand.vmem [shape: f32[2,1,32], index: 12, kind: input, shape index: {}]
  %s13 = inlined_call_operand.vmem [shape: f32[2,1,32], index: 13, kind: input, shape index: {}]
  %s14 = inlined_call_operand.vmem [shape: f32[2,1,32], index: 14, kind: input, shape index: {}]
  %s15 = inlined_call_operand.vmem [shape: bf16[2,32,128], index: 15, kind: input, shape index: {}]
  %s16 = inlined_call_operand.vmem [shape: f32[2,1,128], index: 16, kind: input, shape index: {}]
  %s17 = inlined_call_operand.vmem [shape: bf16[2,128,32], index: 17, kind: input, shape index: {}]
  %s18 = inlined_call_operand.vmem [shape: f32[2,1,32], index: 18, kind: input, shape index: {}]
  %s19 = inlined_call_operand.hbm [shape: f32[2,8,32], index: 19, kind: output, shape index: {}]
  %s20 = sld [smem:[#allocation0]]
  $region117: #{tpu_custom_call.1} parent=0
    _
  %s22 = ssub.s32 1, %s20
  %s23 = scalar_select 0, %s22, %s20
  $region1: #{tpu_custom_call.1} parent=0
    #allocation3 [shape = 'u8[8192]{0}', space=vmem, size = 0x2000, scoped, tag = 'output window, operand 0, single buffered']
    #allocation4 [shape = 's32[2]{0}', space=sflag, size = 0x8, scoped, tag = 'scoped memory for tpu_custom_call.1']
    %24 = vsyncpa [#allocation4], 0
    loop: start=0, step=1, limit=4
    $region2: #{tpu_custom_call.1} parent=1 // loop_pre_header
      _
    $region3: #{tpu_custom_call.1} parent=1 // loop_header
      %s26 = sphi 0, %s30
      %p27 = scmp.ge.s32.totalorder %s26, 4
      %s33 = sphi 0, %s45
      %s34 = sphi 0, %s41
      %s35 = sphi 0, %s33
      %s36 = sphi 0, %s34
      %s37 = sphi 0, %s35
      %s38 = sphi 0, %s36
      %s48 = sphi 0, %s50
      %s51 = sphi 0, %s48
      %s52 = sphi 0, %s51
      %s68 = sphi 0, %s52
      %s74 = sphi 0, %s76
      %s77 = sphi 0, %s74
      %s78 = sphi 0, %s77
      %s94 = sphi 0, %s78
      %s98 = sphi 0, %s98
      %s100 = sphi 0, %s98
      %s101 = sphi 0, %s100
      %s115 = sphi 0, %s101
      %s119 = sphi 0, %s119
      %s121 = sphi 0, %s119
      %s122 = sphi 0, %s121
      %s136 = sphi 0, %s122
      %s140 = sphi 0, %s140
      %s142 = sphi 0, %s140
      %s143 = sphi 0, %s142
      %s157 = sphi 0, %s143
      %s161 = sphi 0, %s161
      %s163 = sphi 0, %s161
      %s164 = sphi 0, %s163
      %s178 = sphi 0, %s164
      %s182 = sphi 0, %s182
      %s184 = sphi 0, %s182
      %s185 = sphi 0, %s184
      %s199 = sphi 0, %s185
      %s205 = sphi 0, %s207
      %s208 = sphi 0, %s205
      %s209 = sphi 0, %s208
      %s225 = sphi 0, %s209
      %s231 = sphi 0, %s233
      %s234 = sphi 0, %s231
      %s235 = sphi 0, %s234
      %s251 = sphi 0, %s235
      %s257 = sphi 0, %s259
      %s260 = sphi 0, %s257
      %s261 = sphi 0, %s260
      %s277 = sphi 0, %s261
      %s283 = sphi 0, %s285
      %s286 = sphi 0, %s283
      %s287 = sphi 0, %s286
      %s303 = sphi 0, %s287
      %s309 = sphi 0, %s311
      %s312 = sphi 0, %s309
      %s313 = sphi 0, %s312
      %s329 = sphi 0, %s313
      %s335 = sphi 0, %s337
      %s338 = sphi 0, %s335
      %s339 = sphi 0, %s338
      %s355 = sphi 0, %s339
      %s361 = sphi 0, %s363
      %s364 = sphi 0, %s361
      %s365 = sphi 0, %s364
      %s381 = sphi 0, %s365
      %s387 = sphi 0, %s389
      %s390 = sphi 0, %s387
      %s391 = sphi 0, %s390
      %s407 = sphi 0, %s391
      %s413 = sphi 0, %s415
      %s416 = sphi 0, %s413
      %s417 = sphi 0, %s416
      %s433 = sphi 0, %s417
      %s439 = sphi 0, %s441
      %s442 = sphi 0, %s439
      %s443 = sphi 0, %s442
      %s459 = sphi 0, %s443
      %s465 = sphi 0, %s467
      %s468 = sphi 0, %s465
      %s469 = sphi 0, %s468
      %s485 = sphi 0, %s469
      %s491 = sphi 0, %s493
      %s494 = sphi 0, %s491
      %s495 = sphi 0, %s494
      %s511 = sphi 0, %s495
      %s517 = sphi 0, %s519
      %s520 = sphi 0, %s517
      %s521 = sphi 0, %s520
      %s537 = sphi 0, %s521
    $region4: #{tpu_custom_call.1} parent=1 // loop_header_branch
      %29 = sbr.rel (%p27) target = $region8
    $region5: #{tpu_custom_call.1} parent=1 // loop_body
      %s31 = ssub.s32 %s26, 1
      %s32 = ssub.s32 %s26, 2
      %s39 = sadd.s32 1, %s34
      %p40 = scmp.ge.s32.totalorder %s39, 2
      %s41 = scalar_select %p40, 0, %s39
      %s42 = sadd.s32 1, %s33
      %s43 = scalar_select %p40, %s42, %s33
      %p44 = scmp.ge.s32.totalorder %s43, 1
      %s45 = scalar_select %p44, 0, %s43
      %s46 = ssub.s32 %s33, %s45
      %p47 = scmp.eq.s32.totalorder %s46, 0
      %s49 = sadd.s32 %s48, 1
      %s50 = scalar_select %p47, %s48, %s49
      %p53 = pneg %p47
      %p54 = scmp.eq.s32.totalorder %s26, 1
      %p55 = por %p53, %p54
      %p56 = scmp.ne.s32.totalorder %s48, %s51
      %p57 = scmp.eq.s32.totalorder %s26, 0
      %p58 = por %p56, %p57
      %p59 = scmp.ne.s32.totalorder %s48, %s51
      %p60 = scmp.eq.s32.totalorder %s31, 1
      %p61 = por %p59, %p60
      %p62 = scmp.ne.s32.totalorder %s51, %s52
      %p63 = scmp.eq.s32.totalorder %s31, 0
      %p64 = por %p62, %p63
      %p65 = scmp.ne.s32.totalorder %s51, %s52
      %p66 = scmp.eq.s32.totalorder %s32, 1
      %p67 = por %p65, %p66
      %p69 = scmp.ne.s32.totalorder %s52, %s68
      %p70 = scmp.eq.s32.totalorder %s32, 0
      %p71 = por %p69, %p70
      %s72 = ssub.s32 %s33, %s45
      %p73 = scmp.eq.s32.totalorder %s72, 0
      %s75 = sadd.s32 %s74, 1
      %s76 = scalar_select %p73, %s74, %s75
      %p79 = pneg %p73
      %p80 = scmp.eq.s32.totalorder %s26, 1
      %p81 = por %p79, %p80
      %p82 = scmp.ne.s32.totalorder %s74, %s77
      %p83 = scmp.eq.s32.totalorder %s26, 0
      %p84 = por %p82, %p83
      %p85 = scmp.ne.s32.totalorder %s74, %s77
      %p86 = scmp.eq.s32.totalorder %s31, 1
      %p87 = por %p85, %p86
      %p88 = scmp.ne.s32.totalorder %s77, %s78
      %p89 = scmp.eq.s32.totalorder %s31, 0
      %p90 = por %p88, %p89
      %p91 = scmp.ne.s32.totalorder %s77, %s78
      %p92 = scmp.eq.s32.totalorder %s32, 1
      %p93 = por %p91, %p92
      %p95 = scmp.ne.s32.totalorder %s78, %s94
      %p96 = scmp.eq.s32.totalorder %s32, 0
      %p97 = por %p95, %p96
      %s99 = sadd.s32 %s98, 1
      %p102 = scmp.eq.s32.totalorder %s26, 1
      %p103 = scmp.ne.s32.totalorder %s98, %s100
      %p104 = scmp.eq.s32.totalorder %s26, 0
      %p105 = por %p103, %p104
      %p106 = scmp.ne.s32.totalorder %s98, %s100
      %p107 = scmp.eq.s32.totalorder %s31, 1
      %p108 = por %p106, %p107
      %p109 = scmp.ne.s32.totalorder %s100, %s101
      %p110 = scmp.eq.s32.totalorder %s31, 0
      %p111 = por %p109, %p110
      %p112 = scmp.ne.s32.totalorder %s100, %s101
      %p113 = scmp.eq.s32.totalorder %s32, 1
      %p114 = por %p112, %p113
      %p116 = scmp.ne.s32.totalorder %s101, %s115
      %p117 = scmp.eq.s32.totalorder %s32, 0
      %p118 = por %p116, %p117
      %s120 = sadd.s32 %s119, 1
      %p123 = scmp.eq.s32.totalorder %s26, 1
      %p124 = scmp.ne.s32.totalorder %s119, %s121
      %p125 = scmp.eq.s32.totalorder %s26, 0
      %p126 = por %p124, %p125
      %p127 = scmp.ne.s32.totalorder %s119, %s121
      %p128 = scmp.eq.s32.totalorder %s31, 1
      %p129 = por %p127, %p128
      %p130 = scmp.ne.s32.totalorder %s121, %s122
      %p131 = scmp.eq.s32.totalorder %s31, 0
      %p132 = por %p130, %p131
      %p133 = scmp.ne.s32.totalorder %s121, %s122
      %p134 = scmp.eq.s32.totalorder %s32, 1
      %p135 = por %p133, %p134
      %p137 = scmp.ne.s32.totalorder %s122, %s136
      %p138 = scmp.eq.s32.totalorder %s32, 0
      %p139 = por %p137, %p138
      %s141 = sadd.s32 %s140, 1
      %p144 = scmp.eq.s32.totalorder %s26, 1
      %p145 = scmp.ne.s32.totalorder %s140, %s142
      %p146 = scmp.eq.s32.totalorder %s26, 0
      %p147 = por %p145, %p146
      %p148 = scmp.ne.s32.totalorder %s140, %s142
      %p149 = scmp.eq.s32.totalorder %s31, 1
      %p150 = por %p148, %p149
      %p151 = scmp.ne.s32.totalorder %s142, %s143
      %p152 = scmp.eq.s32.totalorder %s31, 0
      %p153 = por %p151, %p152
      %p154 = scmp.ne.s32.totalorder %s142, %s143
      %p155 = scmp.eq.s32.totalorder %s32, 1
      %p156 = por %p154, %p155
      %p158 = scmp.ne.s32.totalorder %s143, %s157
      %p159 = scmp.eq.s32.totalorder %s32, 0
      %p160 = por %p158, %p159
      %s162 = sadd.s32 %s161, 1
      %p165 = scmp.eq.s32.totalorder %s26, 1
      %p166 = scmp.ne.s32.totalorder %s161, %s163
      %p167 = scmp.eq.s32.totalorder %s26, 0
      %p168 = por %p166, %p167
      %p169 = scmp.ne.s32.totalorder %s161, %s163
      %p170 = scmp.eq.s32.totalorder %s31, 1
      %p171 = por %p169, %p170
      %p172 = scmp.ne.s32.totalorder %s163, %s164
      %p173 = scmp.eq.s32.totalorder %s31, 0
      %p174 = por %p172, %p173
      %p175 = scmp.ne.s32.totalorder %s163, %s164
      %p176 = scmp.eq.s32.totalorder %s32, 1
      %p177 = por %p175, %p176
      %p179 = scmp.ne.s32.totalorder %s164, %s178
      %p180 = scmp.eq.s32.totalorder %s32, 0
      %p181 = por %p179, %p180
      %s183 = sadd.s32 %s182, 1
      %p186 = scmp.eq.s32.totalorder %s26, 1
      %p187 = scmp.ne.s32.totalorder %s182, %s184
      %p188 = scmp.eq.s32.totalorder %s26, 0
      %p189 = por %p187, %p188
      %p190 = scmp.ne.s32.totalorder %s182, %s184
      %p191 = scmp.eq.s32.totalorder %s31, 1
      %p192 = por %p190, %p191
      %p193 = scmp.ne.s32.totalorder %s184, %s185
      %p194 = scmp.eq.s32.totalorder %s31, 0
      %p195 = por %p193, %p194
      %p196 = scmp.ne.s32.totalorder %s184, %s185
      %p197 = scmp.eq.s32.totalorder %s32, 1
      %p198 = por %p196, %p197
      %p200 = scmp.ne.s32.totalorder %s185, %s199
      %p201 = scmp.eq.s32.totalorder %s32, 0
      %p202 = por %p200, %p201
      %s203 = ssub.s32 %s34, %s41
      %p204 = scmp.eq.s32.totalorder %s203, 0
      %s206 = sadd.s32 %s205, 1
      %s207 = scalar_select %p204, %s205, %s206
      %p210 = pneg %p204
      %p211 = scmp.eq.s32.totalorder %s26, 1
      %p212 = por %p210, %p211
      %p213 = scmp.ne.s32.totalorder %s205, %s208
      %p214 = scmp.eq.s32.totalorder %s26, 0
      %p215 = por %p213, %p214
      %p216 = scmp.ne.s32.totalorder %s205, %s208
      %p217 = scmp.eq.s32.totalorder %s31, 1
      %p218 = por %p216, %p217
      %p219 = scmp.ne.s32.totalorder %s208, %s209
      %p220 = scmp.eq.s32.totalorder %s31, 0
      %p221 = por %p219, %p220
      %p222 = scmp.ne.s32.totalorder %s208, %s209
      %p223 = scmp.eq.s32.totalorder %s32, 1
      %p224 = por %p222, %p223
      %p226 = scmp.ne.s32.totalorder %s209, %s225
      %p227 = scmp.eq.s32.totalorder %s32, 0
      %p228 = por %p226, %p227
      %s229 = ssub.s32 %s34, %s41
      %p230 = scmp.eq.s32.totalorder %s229, 0
      %s232 = sadd.s32 %s231, 1
      %s233 = scalar_select %p230, %s231, %s232
      %p236 = pneg %p230
      %p237 = scmp.eq.s32.totalorder %s26, 1
      %p238 = por %p236, %p237
      %p239 = scmp.ne.s32.totalorder %s231, %s234
      %p240 = scmp.eq.s32.totalorder %s26, 0
      %p241 = por %p239, %p240
      %p242 = scmp.ne.s32.totalorder %s231, %s234
      %p243 = scmp.eq.s32.totalorder %s31, 1
      %p244 = por %p242, %p243
      %p245 = scmp.ne.s32.totalorder %s234, %s235
      %p246 = scmp.eq.s32.totalorder %s31, 0
      %p247 = por %p245, %p246
      %p248 = scmp.ne.s32.totalorder %s234, %s235
      %p249 = scmp.eq.s32.totalorder %s32, 1
      %p250 = por %p248, %p249
      %p252 = scmp.ne.s32.totalorder %s235, %s251
      %p253 = scmp.eq.s32.totalorder %s32, 0
      %p254 = por %p252, %p253
      %s255 = ssub.s32 %s34, %s41
      %p256 = scmp.eq.s32.totalorder %s255, 0
      %s258 = sadd.s32 %s257, 1
      %s259 = scalar_select %p256, %s257, %s258
      %p262 = pneg %p256
      %p263 = scmp.eq.s32.totalorder %s26, 1
      %p264 = por %p262, %p263
      %p265 = scmp.ne.s32.totalorder %s257, %s260
      %p266 = scmp.eq.s32.totalorder %s26, 0
      %p267 = por %p265, %p266
      %p268 = scmp.ne.s32.totalorder %s257, %s260
      %p269 = scmp.eq.s32.totalorder %s31, 1
      %p270 = por %p268, %p269
      %p271 = scmp.ne.s32.totalorder %s260, %s261
      %p272 = scmp.eq.s32.totalorder %s31, 0
      %p273 = por %p271, %p272
      %p274 = scmp.ne.s32.totalorder %s260, %s261
      %p275 = scmp.eq.s32.totalorder %s32, 1
      %p276 = por %p274, %p275
      %p278 = scmp.ne.s32.totalorder %s261, %s277
      %p279 = scmp.eq.s32.totalorder %s32, 0
      %p280 = por %p278, %p279
      %s281 = ssub.s32 %s34, %s41
      %p282 = scmp.eq.s32.totalorder %s281, 0
      %s284 = sadd.s32 %s283, 1
      %s285 = scalar_select %p282, %s283, %s284
      %p288 = pneg %p282
      %p289 = scmp.eq.s32.totalorder %s26, 1
      %p290 = por %p288, %p289
      %p291 = scmp.ne.s32.totalorder %s283, %s286
      %p292 = scmp.eq.s32.totalorder %s26, 0
      %p293 = por %p291, %p292
      %p294 = scmp.ne.s32.totalorder %s283, %s286
      %p295 = scmp.eq.s32.totalorder %s31, 1
      %p296 = por %p294, %p295
      %p297 = scmp.ne.s32.totalorder %s286, %s287
      %p298 = scmp.eq.s32.totalorder %s31, 0
      %p299 = por %p297, %p298
      %p300 = scmp.ne.s32.totalorder %s286, %s287
      %p301 = scmp.eq.s32.totalorder %s32, 1
      %p302 = por %p300, %p301
      %p304 = scmp.ne.s32.totalorder %s287, %s303
      %p305 = scmp.eq.s32.totalorder %s32, 0
      %p306 = por %p304, %p305
      %s307 = ssub.s32 %s34, %s41
      %p308 = scmp.eq.s32.totalorder %s307, 0
      %s310 = sadd.s32 %s309, 1
      %s311 = scalar_select %p308, %s309, %s310
      %p314 = pneg %p308
      %p315 = scmp.eq.s32.totalorder %s26, 1
      %p316 = por %p314, %p315
      %p317 = scmp.ne.s32.totalorder %s309, %s312
      %p318 = scmp.eq.s32.totalorder %s26, 0
      %p319 = por %p317, %p318
      %p320 = scmp.ne.s32.totalorder %s309, %s312
      %p321 = scmp.eq.s32.totalorder %s31, 1
      %p322 = por %p320, %p321
      %p323 = scmp.ne.s32.totalorder %s312, %s313
      %p324 = scmp.eq.s32.totalorder %s31, 0
      %p325 = por %p323, %p324
      %p326 = scmp.ne.s32.totalorder %s312, %s313
      %p327 = scmp.eq.s32.totalorder %s32, 1
      %p328 = por %p326, %p327
      %p330 = scmp.ne.s32.totalorder %s313, %s329
      %p331 = scmp.eq.s32.totalorder %s32, 0
      %p332 = por %p330, %p331
      %s333 = ssub.s32 %s34, %s41
      %p334 = scmp.eq.s32.totalorder %s333, 0
      %s336 = sadd.s32 %s335, 1
      %s337 = scalar_select %p334, %s335, %s336
      %p340 = pneg %p334
      %p341 = scmp.eq.s32.totalorder %s26, 1
      %p342 = por %p340, %p341
      %p343 = scmp.ne.s32.totalorder %s335, %s338
      %p344 = scmp.eq.s32.totalorder %s26, 0
      %p345 = por %p343, %p344
      %p346 = scmp.ne.s32.totalorder %s335, %s338
      %p347 = scmp.eq.s32.totalorder %s31, 1
      %p348 = por %p346, %p347
      %p349 = scmp.ne.s32.totalorder %s338, %s339
      %p350 = scmp.eq.s32.totalorder %s31, 0
      %p351 = por %p349, %p350
      %p352 = scmp.ne.s32.totalorder %s338, %s339
      %p353 = scmp.eq.s32.totalorder %s32, 1
      %p354 = por %p352, %p353
      %p356 = scmp.ne.s32.totalorder %s339, %s355
      %p357 = scmp.eq.s32.totalorder %s32, 0
      %p358 = por %p356, %p357
      %s359 = ssub.s32 %s34, %s41
      %p360 = scmp.eq.s32.totalorder %s359, 0
      %s362 = sadd.s32 %s361, 1
      %s363 = scalar_select %p360, %s361, %s362
      %p366 = pneg %p360
      %p367 = scmp.eq.s32.totalorder %s26, 1
      %p368 = por %p366, %p367
      %p369 = scmp.ne.s32.totalorder %s361, %s364
      %p370 = scmp.eq.s32.totalorder %s26, 0
      %p371 = por %p369, %p370
      %p372 = scmp.ne.s32.totalorder %s361, %s364
      %p373 = scmp.eq.s32.totalorder %s31, 1
      %p374 = por %p372, %p373
      %p375 = scmp.ne.s32.totalorder %s364, %s365
      %p376 = scmp.eq.s32.totalorder %s31, 0
      %p377 = por %p375, %p376
      %p378 = scmp.ne.s32.totalorder %s364, %s365
      %p379 = scmp.eq.s32.totalorder %s32, 1
      %p380 = por %p378, %p379
      %p382 = scmp.ne.s32.totalorder %s365, %s381
      %p383 = scmp.eq.s32.totalorder %s32, 0
      %p384 = por %p382, %p383
      %s385 = ssub.s32 %s34, %s41
      %p386 = scmp.eq.s32.totalorder %s385, 0
      %s388 = sadd.s32 %s387, 1
      %s389 = scalar_select %p386, %s387, %s388
      %p392 = pneg %p386
      %p393 = scmp.eq.s32.totalorder %s26, 1
      %p394 = por %p392, %p393
      %p395 = scmp.ne.s32.totalorder %s387, %s390
      %p396 = scmp.eq.s32.totalorder %s26, 0
      %p397 = por %p395, %p396
      %p398 = scmp.ne.s32.totalorder %s387, %s390
      %p399 = scmp.eq.s32.totalorder %s31, 1
      %p400 = por %p398, %p399
      %p401 = scmp.ne.s32.totalorder %s390, %s391
      %p402 = scmp.eq.s32.totalorder %s31, 0
      %p403 = por %p401, %p402
      %p404 = scmp.ne.s32.totalorder %s390, %s391
      %p405 = scmp.eq.s32.totalorder %s32, 1
      %p406 = por %p404, %p405
      %p408 = scmp.ne.s32.totalorder %s391, %s407
      %p409 = scmp.eq.s32.totalorder %s32, 0
      %p410 = por %p408, %p409
      %s411 = ssub.s32 %s34, %s41
      %p412 = scmp.eq.s32.totalorder %s411, 0
      %s414 = sadd.s32 %s413, 1
      %s415 = scalar_select %p412, %s413, %s414
      %p418 = pneg %p412
      %p419 = scmp.eq.s32.totalorder %s26, 1
      %p420 = por %p418, %p419
      %p421 = scmp.ne.s32.totalorder %s413, %s416
      %p422 = scmp.eq.s32.totalorder %s26, 0
      %p423 = por %p421, %p422
      %p424 = scmp.ne.s32.totalorder %s413, %s416
      %p425 = scmp.eq.s32.totalorder %s31, 1
      %p426 = por %p424, %p425
      %p427 = scmp.ne.s32.totalorder %s416, %s417
      %p428 = scmp.eq.s32.totalorder %s31, 0
      %p429 = por %p427, %p428
      %p430 = scmp.ne.s32.totalorder %s416, %s417
      %p431 = scmp.eq.s32.totalorder %s32, 1
      %p432 = por %p430, %p431
      %p434 = scmp.ne.s32.totalorder %s417, %s433
      %p435 = scmp.eq.s32.totalorder %s32, 0
      %p436 = por %p434, %p435
      %s437 = ssub.s32 %s34, %s41
      %p438 = scmp.eq.s32.totalorder %s437, 0
      %s440 = sadd.s32 %s439, 1
      %s441 = scalar_select %p438, %s439, %s440
      %p444 = pneg %p438
      %p445 = scmp.eq.s32.totalorder %s26, 1
      %p446 = por %p444, %p445
      %p447 = scmp.ne.s32.totalorder %s439, %s442
      %p448 = scmp.eq.s32.totalorder %s26, 0
      %p449 = por %p447, %p448
      %p450 = scmp.ne.s32.totalorder %s439, %s442
      %p451 = scmp.eq.s32.totalorder %s31, 1
      %p452 = por %p450, %p451
      %p453 = scmp.ne.s32.totalorder %s442, %s443
      %p454 = scmp.eq.s32.totalorder %s31, 0
      %p455 = por %p453, %p454
      %p456 = scmp.ne.s32.totalorder %s442, %s443
      %p457 = scmp.eq.s32.totalorder %s32, 1
      %p458 = por %p456, %p457
      %p460 = scmp.ne.s32.totalorder %s443, %s459
      %p461 = scmp.eq.s32.totalorder %s32, 0
      %p462 = por %p460, %p461
      %s463 = ssub.s32 %s34, %s41
      %p464 = scmp.eq.s32.totalorder %s463, 0
      %s466 = sadd.s32 %s465, 1
      %s467 = scalar_select %p464, %s465, %s466
      %p470 = pneg %p464
      %p471 = scmp.eq.s32.totalorder %s26, 1
      %p472 = por %p470, %p471
      %p473 = scmp.ne.s32.totalorder %s465, %s468
      %p474 = scmp.eq.s32.totalorder %s26, 0
      %p475 = por %p473, %p474
      %p476 = scmp.ne.s32.totalorder %s465, %s468
      %p477 = scmp.eq.s32.totalorder %s31, 1
      %p478 = por %p476, %p477
      %p479 = scmp.ne.s32.totalorder %s468, %s469
      %p480 = scmp.eq.s32.totalorder %s31, 0
      %p481 = por %p479, %p480
      %p482 = scmp.ne.s32.totalorder %s468, %s469
      %p483 = scmp.eq.s32.totalorder %s32, 1
      %p484 = por %p482, %p483
      %p486 = scmp.ne.s32.totalorder %s469, %s485
      %p487 = scmp.eq.s32.totalorder %s32, 0
      %p488 = por %p486, %p487
      %s489 = ssub.s32 %s34, %s41
      %p490 = scmp.eq.s32.totalorder %s489, 0
      %s492 = sadd.s32 %s491, 1
      %s493 = scalar_select %p490, %s491, %s492
      %p496 = pneg %p490
      %p497 = scmp.eq.s32.totalorder %s26, 1
      %p498 = por %p496, %p497
      %p499 = scmp.ne.s32.totalorder %s491, %s494
      %p500 = scmp.eq.s32.totalorder %s26, 0
      %p501 = por %p499, %p500
      %p502 = scmp.ne.s32.totalorder %s491, %s494
      %p503 = scmp.eq.s32.totalorder %s31, 1
      %p504 = por %p502, %p503
      %p505 = scmp.ne.s32.totalorder %s494, %s495
      %p506 = scmp.eq.s32.totalorder %s31, 0
      %p507 = por %p505, %p506
      %p508 = scmp.ne.s32.totalorder %s494, %s495
      %p509 = scmp.eq.s32.totalorder %s32, 1
      %p510 = por %p508, %p509
      %p512 = scmp.ne.s32.totalorder %s495, %s511
      %p513 = scmp.eq.s32.totalorder %s32, 0
      %p514 = por %p512, %p513
      %s515 = ssub.s32 %s33, %s45
      %p516 = scmp.eq.s32.totalorder %s515, 0
      %s518 = sadd.s32 %s517, 1
      %s519 = scalar_select %p516, %s517, %s518
      %p522 = pneg %p516
      %p523 = scmp.eq.s32.totalorder %s26, 1
      %p524 = por %p522, %p523
      %p525 = scmp.ne.s32.totalorder %s517, %s520
      %p526 = scmp.eq.s32.totalorder %s26, 0
      %p527 = por %p525, %p526
      %p528 = scmp.ne.s32.totalorder %s517, %s520
      %p529 = scmp.eq.s32.totalorder %s31, 1
      %p530 = por %p528, %p529
      %p531 = scmp.ne.s32.totalorder %s520, %s521
      %p532 = scmp.eq.s32.totalorder %s31, 0
      %p533 = por %p531, %p532
      %p534 = scmp.ne.s32.totalorder %s520, %s521
      %p535 = scmp.eq.s32.totalorder %s32, 1
      %p536 = por %p534, %p535
      %p538 = scmp.ne.s32.totalorder %s521, %s537
      %p539 = scmp.eq.s32.totalorder %s32, 0
      %p540 = por %p538, %p539
      %p541 = scmp.le.s32.totalorder 1, %s26
      %p542 = scmp.lt.s32.totalorder %s26, 3
      %p543 = pnand %p541, %p542
      %p544 = pneg %p543
      // Predicated region
      $region9: #{tpu_custom_call.1} parent=5 // pred_check
        _
      $region10: #{tpu_custom_call.1} parent=5 // pred_check_branch
        %546 = sbr.rel (%p543) target = $region12
      $region11: #{tpu_custom_call.1} parent=5 // pred_region
        %s547 = ssub.s32 %s26, 1
        // Predicated region
        $region13: #{tpu_custom_call.1} parent=11 // pred_check
          %p548 = pneg %p64
        $region14: #{tpu_custom_call.1} parent=11 // pred_check_branch
          %550 = sbr.rel (%p548) target = $region16
        $region15: #{tpu_custom_call.1} parent=11 // pred_region
          %s551 = smul.u32 2, %s35
          %p552 = scmp.lt.s32.totalorder %s551, 1
          %s553 = scalar_select %p552, %s551, 1
          %s554 = smul.addr %s553, 8
          %s555 = scalar_lea.vmem %s0, %s554
          %s556 = smul.u32 2, %s35
        $region16: #{tpu_custom_call.1} parent=11 // pred_fallthru
          _
        // Predicated region
        $region17: #{tpu_custom_call.1} parent=11 // pred_check
          %p557 = pneg %p90
        $region18: #{tpu_custom_call.1} parent=11 // pred_check_branch
          %559 = sbr.rel (%p557) target = $region20
        $region19: #{tpu_custom_call.1} parent=11 // pred_region
          %s560 = smul.u32 2, %s35
          %p561 = scmp.lt.s32.totalorder %s560, 1
          %s562 = scalar_select %p561, %s560, 1
          %s563 = scalar_lea.vmem %s1, %s562
          %s564 = smul.u32 2, %s35
        $region20: #{tpu_custom_call.1} parent=11 // pred_fallthru
          _
        // Predicated region
        $region21: #{tpu_custom_call.1} parent=11 // pred_check
          %p565 = pneg %p111
        $region22: #{tpu_custom_call.1} parent=11 // pred_check_branch
          %567 = sbr.rel (%p565) target = $region24
        $region23: #{tpu_custom_call.1} parent=11 // pred_region
          _
        $region24: #{tpu_custom_call.1} parent=11 // pred_fallthru
          _
        // Predicated region
        $region25: #{tpu_custom_call.1} parent=11 // pred_check
          %p568 = pneg %p132
        $region26: #{tpu_custom_call.1} parent=11 // pred_check_branch
          %570 = sbr.rel (%p568) target = $region28
        $region27: #{tpu_custom_call.1} parent=11 // pred_region
          _
        $region28: #{tpu_custom_call.1} parent=11 // pred_fallthru
          _
        // Predicated region
        $region29: #{tpu_custom_call.1} parent=11 // pred_check
          %p571 = pneg %p153
        $region30: #{tpu_custom_call.1} parent=11 // pred_check_branch
          %573 = sbr.rel (%p571) target = $region32
        $region31: #{tpu_custom_call.1} parent=11 // pred_region
          _
        $region32: #{tpu_custom_call.1} parent=11 // pred_fallthru
          _
        // Predicated region
        $region33: #{tpu_custom_call.1} parent=11 // pred_check
          %p574 = pneg %p174
        $region34: #{tpu_custom_call.1} parent=11 // pred_check_branch
          %576 = sbr.rel (%p574) target = $region36
        $region35: #{tpu_custom_call.1} parent=11 // pred_region
          _
        $region36: #{tpu_custom_call.1} parent=11 // pred_fallthru
          _
        // Predicated region
        $region37: #{tpu_custom_call.1} parent=11 // pred_check
          %p577 = pneg %p195
        $region38: #{tpu_custom_call.1} parent=11 // pred_check_branch
          %579 = sbr.rel (%p577) target = $region40
        $region39: #{tpu_custom_call.1} parent=11 // pred_region
          _
        $region40: #{tpu_custom_call.1} parent=11 // pred_fallthru
          _
      $region12: #{tpu_custom_call.1} parent=5 // pred_fallthru
        _
      %p580 = scmp.lt.s32.totalorder %s26, 2
      // Predicated region
      $region41: #{tpu_custom_call.1} parent=5 // pred_check
        %p581 = pneg %p580
      $region42: #{tpu_custom_call.1} parent=5 // pred_check_branch
        %583 = sbr.rel (%p581) target = $region44
      $region43: #{tpu_custom_call.1} parent=5 // pred_region
        // Predicated region
        $region45: #{tpu_custom_call.1} parent=43 // pred_check
          %p584 = pneg %p215
        $region46: #{tpu_custom_call.1} parent=43 // pred_check_branch
          %586 = sbr.rel (%p584) target = $region48
        $region47: #{tpu_custom_call.1} parent=43 // pred_region
          %p587 = scmp.lt.s32.totalorder %s34, 1
          %s588 = scalar_select %p587, %s34, 1
          %s589 = scalar_lea.vmem %s7, %s588
        $region48: #{tpu_custom_call.1} parent=43 // pred_fallthru
          _
        // Predicated region
        $region49: #{tpu_custom_call.1} parent=43 // pred_check
          %p590 = pneg %p241
        $region50: #{tpu_custom_call.1} parent=43 // pred_check_branch
          %592 = sbr.rel (%p590) target = $region52
        $region51: #{tpu_custom_call.1} parent=43 // pred_region
          %p593 = scmp.lt.s32.totalorder %s34, 1
          %s594 = scalar_select %p593, %s34, 1
          %s595 = scalar_lea.vmem %s8, %s594
        $region52: #{tpu_custom_call.1} parent=43 // pred_fallthru
          _
        // Predicated region
        $region53: #{tpu_custom_call.1} parent=43 // pred_check
          %p596 = pneg %p267
        $region54: #{tpu_custom_call.1} parent=43 // pred_check_branch
          %598 = sbr.rel (%p596) target = $region56
        $region55: #{tpu_custom_call.1} parent=43 // pred_region
          %p599 = scmp.lt.s32.totalorder %s34, 1
          %s600 = scalar_select %p599, %s34, 1
          %s601 = smul.addr %s600, 4
          %s602 = smul.addr %s601, 4
          %s603 = scalar_lea.vmem %s9, %s602
        $region56: #{tpu_custom_call.1} parent=43 // pred_fallthru
          _
        // Predicated region
        $region57: #{tpu_custom_call.1} parent=43 // pred_check
          %p604 = pneg %p293
        $region58: #{tpu_custom_call.1} parent=43 // pred_check_branch
          %606 = sbr.rel (%p604) target = $region60
        $region59: #{tpu_custom_call.1} parent=43 // pred_region
          %p607 = scmp.lt.s32.totalorder %s34, 1
          %s608 = scalar_select %p607, %s34, 1
          %s609 = scalar_lea.vmem %s10, %s608
        $region60: #{tpu_custom_call.1} parent=43 // pred_fallthru
          _
        // Predicated region
        $region61: #{tpu_custom_call.1} parent=43 // pred_check
          %p610 = pneg %p319
        $region62: #{tpu_custom_call.1} parent=43 // pred_check_branch
          %612 = sbr.rel (%p610) target = $region64
        $region63: #{tpu_custom_call.1} parent=43 // pred_region
          %p613 = scmp.lt.s32.totalorder %s34, 1
          %s614 = scalar_select %p613, %s34, 1
          %s615 = smul.addr %s614, 4
          %s616 = smul.addr %s615, 4
          %s617 = scalar_lea.vmem %s11, %s616
        $region64: #{tpu_custom_call.1} parent=43 // pred_fallthru
          _
        // Predicated region
        $region65: #{tpu_custom_call.1} parent=43 // pred_check
          %p618 = pneg %p345
        $region66: #{tpu_custom_call.1} parent=43 // pred_check_branch
          %620 = sbr.rel (%p618) target = $region68
        $region67: #{tpu_custom_call.1} parent=43 // pred_region
          %p621 = scmp.lt.s32.totalorder %s34, 1
          %s622 = scalar_select %p621, %s34, 1
          %s623 = scalar_lea.vmem %s12, %s622
        $region68: #{tpu_custom_call.1} parent=43 // pred_fallthru
          _
        // Predicated region
        $region69: #{tpu_custom_call.1} parent=43 // pred_check
          %p624 = pneg %p371
        $region70: #{tpu_custom_call.1} parent=43 // pred_check_branch
          %626 = sbr.rel (%p624) target = $region72
        $region71: #{tpu_custom_call.1} parent=43 // pred_region
          %p627 = scmp.lt.s32.totalorder %s34, 1
          %s628 = scalar_select %p627, %s34, 1
          %s629 = scalar_lea.vmem %s13, %s628
        $region72: #{tpu_custom_call.1} parent=43 // pred_fallthru
          _
        // Predicated region
        $region73: #{tpu_custom_call.1} parent=43 // pred_check
          %p630 = pneg %p397
        $region74: #{tpu_custom_call.1} parent=43 // pred_check_branch
          %632 = sbr.rel (%p630) target = $region76
        $region75: #{tpu_custom_call.1} parent=43 // pred_region
          %p633 = scmp.lt.s32.totalorder %s34, 1
          %s634 = scalar_select %p633, %s34, 1
          %s635 = scalar_lea.vmem %s14, %s634
        $region76: #{tpu_custom_call.1} parent=43 // pred_fallthru
          _
        // Predicated region
        $region77: #{tpu_custom_call.1} parent=43 // pred_check
          %p636 = pneg %p423
        $region78: #{tpu_custom_call.1} parent=43 // pred_check_branch
          %638 = sbr.rel (%p636) target = $region80
        $region79: #{tpu_custom_call.1} parent=43 // pred_region
          %p639 = scmp.lt.s32.totalorder %s34, 1
          %s640 = scalar_select %p639, %s34, 1
          %s641 = smul.addr %s640, 4
          %s642 = smul.addr %s641, 4
          %s643 = scalar_lea.vmem %s15, %s642
        $region80: #{tpu_custom_call.1} parent=43 // pred_fallthru
          _
        // Predicated region
        $region81: #{tpu_custom_call.1} parent=43 // pred_check
          %p644 = pneg %p449
        $region82: #{tpu_custom_call.1} parent=43 // pred_check_branch
          %646 = sbr.rel (%p644) target = $region84
        $region83: #{tpu_custom_call.1} parent=43 // pred_region
          %p647 = scmp.lt.s32.totalorder %s34, 1
          %s648 = scalar_select %p647, %s34, 1
          %s649 = scalar_lea.vmem %s16, %s648
        $region84: #{tpu_custom_call.1} parent=43 // pred_fallthru
          _
        // Predicated region
        $region85: #{tpu_custom_call.1} parent=43 // pred_check
          %p650 = pneg %p475
        $region86: #{tpu_custom_call.1} parent=43 // pred_check_branch
          %652 = sbr.rel (%p650) target = $region88
        $region87: #{tpu_custom_call.1} parent=43 // pred_region
          %p653 = scmp.lt.s32.totalorder %s34, 1
          %s654 = scalar_select %p653, %s34, 1
          %s655 = smul.addr %s654, 16
          %s656 = smul.addr %s655, 4
          %s657 = scalar_lea.vmem %s17, %s656
        $region88: #{tpu_custom_call.1} parent=43 // pred_fallthru
          _
        // Predicated region
        $region89: #{tpu_custom_call.1} parent=43 // pred_check
          %p658 = pneg %p501
        $region90: #{tpu_custom_call.1} parent=43 // pred_check_branch
          %660 = sbr.rel (%p658) target = $region92
        $region91: #{tpu_custom_call.1} parent=43 // pred_region
          %p661 = scmp.lt.s32.totalorder %s34, 1
          %s662 = scalar_select %p661, %s34, 1
          %s663 = scalar_lea.vmem %s18, %s662
        $region92: #{tpu_custom_call.1} parent=43 // pred_fallthru
          _
      $region44: #{tpu_custom_call.1} parent=5 // pred_fallthru
        _
      %p664 = scmp.le.s32.totalorder 1, %s26
      %p665 = scmp.lt.s32.totalorder %s26, 3
      %p666 = pnand %p664, %p665
      %p667 = pneg %p666
      // Predicated region
      $region93: #{tpu_custom_call.1} parent=5 // pred_check
        _
      $region94: #{tpu_custom_call.1} parent=5 // pred_check_branch
        %669 = sbr.rel (%p666) target = $region96
      $region95: #{tpu_custom_call.1} parent=5 // pred_region
        %s670 = ssub.s32 %s26, 1
        %s671 = smul.u32 2, %s35
        %p672 = scmp.lt.s32.totalorder %s671, 1
        %s673 = scalar_select %p672, %s671, 1
        %s674 = smul.addr %s673, 8
        %s675 = scalar_lea.vmem %s0, %s674
        %p676 = pneg %p64
        %p677 = pneg %p61
        %s678 = smul.u32 2, %s35
        %p679 = scmp.lt.s32.totalorder %s678, 1
        %s680 = scalar_select %p679, %s678, 1
        %s681 = scalar_lea.vmem %s1, %s680
        %p682 = pneg %p90
        %p683 = pneg %p87
        %p684 = pneg %p111
        %p685 = pneg %p108
        %p686 = pneg %p132
        %p687 = pneg %p129
        %p688 = pneg %p153
        %p689 = pneg %p150
        %p690 = pneg %p174
        %p691 = pneg %p171
        %p692 = pneg %p195
        %p693 = pneg %p192
        %p694 = scmp.lt.s32.totalorder %s36, 1
        %s695 = scalar_select %p694, %s36, 1
        %s696 = scalar_lea.vmem %s7, %s695
        %p697 = pneg %p221
        %p698 = pneg %p218
        %p699 = scmp.lt.s32.totalorder %s36, 1
        %s700 = scalar_select %p699, %s36, 1
        %s701 = scalar_lea.vmem %s8, %s700
        %p702 = pneg %p247
        %p703 = pneg %p244
        %p704 = scmp.lt.s32.totalorder %s36, 1
        %s705 = scalar_select %p704, %s36, 1
        %s706 = smul.addr %s705, 4
        %s707 = smul.addr %s706, 4
        %s708 = scalar_lea.vmem %s9, %s707
        %p709 = pneg %p273
        %p710 = pneg %p270
        %p711 = scmp.lt.s32.totalorder %s36, 1
        %s712 = scalar_select %p711, %s36, 1
        %s713 = scalar_lea.vmem %s10, %s712
        %p714 = pneg %p299
        %p715 = pneg %p296
        %p716 = scmp.lt.s32.totalorder %s36, 1
        %s717 = scalar_select %p716, %s36, 1
        %s718 = smul.addr %s717, 4
        %s719 = smul.addr %s718, 4
        %s720 = scalar_lea.vmem %s11, %s719
        %p721 = pneg %p325
        %p722 = pneg %p322
        %p723 = scmp.lt.s32.totalorder %s36, 1
        %s724 = scalar_select %p723, %s36, 1
        %s725 = scalar_lea.vmem %s12, %s724
        %p726 = pneg %p351
        %p727 = pneg %p348
        %p728 = scmp.lt.s32.totalorder %s36, 1
        %s729 = scalar_select %p728, %s36, 1
        %s730 = scalar_lea.vmem %s13, %s729
        %p731 = pneg %p377
        %p732 = pneg %p374
        %p733 = scmp.lt.s32.totalorder %s36, 1
        %s734 = scalar_select %p733, %s36, 1
        %s735 = scalar_lea.vmem %s14, %s734
        %p736 = pneg %p403
        %p737 = pneg %p400
        %p738 = scmp.lt.s32.totalorder %s36, 1
        %s739 = scalar_select %p738, %s36, 1
        %s740 = smul.addr %s739, 4
        %s741 = smul.addr %s740, 4
        %s742 = scalar_lea.vmem %s15, %s741
        %p743 = pneg %p429
        %p744 = pneg %p426
        %p745 = scmp.lt.s32.totalorder %s36, 1
        %s746 = scalar_select %p745, %s36, 1
        %s747 = scalar_lea.vmem %s16, %s746
        %p748 = pneg %p455
        %p749 = pneg %p452
        %p750 = scmp.lt.s32.totalorder %s36, 1
        %s751 = scalar_select %p750, %s36, 1
        %s752 = smul.addr %s751, 16
        %s753 = smul.addr %s752, 4
        %s754 = scalar_lea.vmem %s17, %s753
        %p755 = pneg %p481
        %p756 = pneg %p478
        %p757 = scmp.lt.s32.totalorder %s36, 1
        %s758 = scalar_select %p757, %s36, 1
        %s759 = scalar_lea.vmem %s18, %s758
        %p760 = pneg %p507
        %p761 = pneg %p504
        %p762 = pneg %p533
        %p763 = pneg %p530
        %s764 = smul.u32 2, %s35
        %p765 = scmp.lt.s32.totalorder %s764, 1
        %s766 = scalar_select %p765, %s764, 1
        %s767 = smul.addr %s766, 8
        %s768 = scalar_lea.vmem %s0, %s767
        %s769 = smul.u32 2, %s35
        %s770 = smul.u32 2, %s35
        %p771 = scmp.lt.s32.totalorder %s770, 1
        %s772 = scalar_select %p771, %s770, 1
        %s773 = scalar_lea.vmem %s1, %s772
        %s774 = smul.u32 2, %s35
        %p775 = scmp.lt.s32.totalorder %s36, 1
        %s776 = scalar_select %p775, %s36, 1
        %s777 = scalar_lea.vmem %s7, %s776
        %p778 = scmp.lt.s32.totalorder %s36, 1
        %s779 = scalar_select %p778, %s36, 1
        %s780 = scalar_lea.vmem %s8, %s779
        %p781 = scmp.lt.s32.totalorder %s36, 1
        %s782 = scalar_select %p781, %s36, 1
        %s783 = smul.addr %s782, 4
        %s784 = smul.addr %s783, 4
        %s785 = scalar_lea.vmem %s9, %s784
        %p786 = scmp.lt.s32.totalorder %s36, 1
        %s787 = scalar_select %p786, %s36, 1
        %s788 = scalar_lea.vmem %s10, %s787
        %p789 = scmp.lt.s32.totalorder %s36, 1
        %s790 = scalar_select %p789, %s36, 1
        %s791 = smul.addr %s790, 4
        %s792 = smul.addr %s791, 4
        %s793 = scalar_lea.vmem %s11, %s792
        %p794 = scmp.lt.s32.totalorder %s36, 1
        %s795 = scalar_select %p794, %s36, 1
        %s796 = scalar_lea.vmem %s12, %s795
        %p797 = scmp.lt.s32.totalorder %s36, 1
        %s798 = scalar_select %p797, %s36, 1
        %s799 = scalar_lea.vmem %s13, %s798
        %p800 = scmp.lt.s32.totalorder %s36, 1
        %s801 = scalar_select %p800, %s36, 1
        %s802 = scalar_lea.vmem %s14, %s801
        %p803 = scmp.lt.s32.totalorder %s36, 1
        %s804 = scalar_select %p803, %s36, 1
        %s805 = smul.addr %s804, 4
        %s806 = smul.addr %s805, 4
        %s807 = scalar_lea.vmem %s15, %s806
        %p808 = scmp.lt.s32.totalorder %s36, 1
        %s809 = scalar_select %p808, %s36, 1
        %s810 = scalar_lea.vmem %s16, %s809
        %p811 = scmp.lt.s32.totalorder %s36, 1
        %s812 = scalar_select %p811, %s36, 1
        %s813 = smul.addr %s812, 16
        %s814 = smul.addr %s813, 4
        %s815 = scalar_lea.vmem %s17, %s814
        %p816 = scmp.lt.s32.totalorder %s36, 1
        %s817 = scalar_select %p816, %s36, 1
        %s818 = scalar_lea.vmem %s18, %s817
        %s819 = smul.u32 2, %s35
        %p821 = scmp.eq.s32.totalorder %s36, 0
        // Predicated region
        $region97: #{tpu_custom_call.1} parent=95 // pred_check
          %p822 = pneg %p821
        $region98: #{tpu_custom_call.1} parent=95 // pred_check_branch
          %824 = sbr.rel (%p822) target = $region100
        $region99: #{tpu_custom_call.1} parent=95 // pred_region
          %v825 = vld [vmem:[%s768] sm:$0xff]
          %v826 = vld [vmem:[%s768 + $0x8] sm:$0xff]
          %v827 = vld [vmem:[%s2] sm:$0x1]
          %v828 = vld [vmem:[%s3] sm:$0x1]
          %vm829 = vcmask 261120
          %v830 = vsel %vm829, %v825, 0.0
          %831 = vadd.xlane.f32.xlu0 %v830
          %v832 = vpop.xlane.xlu0 %831
          %v833 = vsel %vm829, %v826, 0.0
          %834 = vadd.xlane.f32.xlu0 %v833
          %v835 = vpop.xlane.xlu0 %834
          %v836 = vrcp.pop 32.0
          %v837 = vmul.f32 32.0, %v836
          %v838 = vsub.f32 1.0, %v837
          %v839 = vmul.f32 %v836, %v838
          %v840 = vadd.f32 %v836, %v839
          %vm841 = vweird.f32 %v836
          %v842 = vsel %vm841, %v836, %v840
          %v843 = vmul.f32 %v832, %v842
          %v844 = vmul.f32 %v835, %v842
          %v845 = vsub.f32 %v825, %v843
          %v846 = vsub.f32 %v826, %v844
          %v847 = vmul.f32 %v845, %v845
          %v848 = vmul.f32 %v846, %v846
          %v849 = vsel %vm829, %v847, 0.0
          %850 = vadd.xlane.f32.xlu0 %v849
          %v851 = vpop.xlane.xlu0 %850
          %v852 = vsel %vm829, %v848, 0.0
          %853 = vadd.xlane.f32.xlu0 %v852
          %v854 = vpop.xlane.xlu0 %853
          %v855 = vmul.f32 %v851, %v842
          %v856 = vmul.f32 %v854, %v842
          %v857 = vadd.f32 %v855, 1e-12
          %v858 = vadd.f32 %v856, 1e-12
          %v859 = vrsqrt.pop %v857
          %v860 = vmul.f32 %v859, %v857
          %v861 = vmul.f32 %v860, %v859
          %v862 = vmul.f32 0.5, %v861
          %v863 = vsub.f32 1.5, %v862
          %v864 = vmul.f32 %v859, %v863
          %vm865 = vweird.f32 %v857
          %vm866 = vweird.f32 %v859
          %vm867 = vmor %vm865, %vm866
          %v868 = vsel %vm867, %v859, %v864
          %v869 = vrsqrt.pop %v858
          %v870 = vmul.f32 %v869, %v858
          %v871 = vmul.f32 %v870, %v869
          %v872 = vmul.f32 0.5, %v871
          %v873 = vsub.f32 1.5, %v872
          %v874 = vmul.f32 %v869, %v873
          %vm875 = vweird.f32 %v858
          %vm876 = vweird.f32 %v869
          %vm877 = vmor %vm875, %vm876
          %v878 = vsel %vm877, %v869, %v874
          %v879 = vmul.f32 %v845, %v868
          %v880 = vmul.f32 %v846, %v878
          %v882 = vperm.slane %v827, 0
          %v884 = vmul.f32 %v879, %v882
          %v885 = vmul.f32 %v880, %v882
          %v887 = vperm.slane %v828, 0
          %v889 = vadd.f32 %v884, %v887
          %v890 = vadd.f32 %v885, %v887
          %v891 = vld [vmem:[%s4] sm:$0x1]
          %v893 = vperm.slane %v891, 0
          %v895 = vadd.f32 %v889, %v893
          %v896 = vadd.f32 %v890, %v893
          %897 = vst.msk [vmem:[#allocation2] sm:$0xff] %vm829, %v895
          %898 = vst.msk [vmem:[#allocation2 + $0x8] sm:$0xff] %vm829, %v896
        $region100: #{tpu_custom_call.1} parent=95 // pred_fallthru
          _
        %v899 = vld [vmem:[#allocation2] sm:$0xff]
        %v900 = vld [vmem:[#allocation2 + $0x8] sm:$0xff]
        %v901 = vld [vmem:[%s777] sm:$0x1]
        %v902 = vld [vmem:[%s780] sm:$0x1]
        %vm903 = vcmask 261120
        %v904 = vsel %vm903, %v899, 0.0
        %905 = vadd.xlane.f32.xlu0 %v904
        %v906 = vpop.xlane.xlu0 %905
        %v907 = vsel %vm903, %v900, 0.0
        %908 = vadd.xlane.f32.xlu0 %v907
        %v909 = vpop.xlane.xlu0 %908
        %v910 = vrcp.pop 32.0
        %v911 = vmul.f32 32.0, %v910
        %v912 = vsub.f32 1.0, %v911
        %v913 = vmul.f32 %v910, %v912
        %v914 = vadd.f32 %v910, %v913
        %vm915 = vweird.f32 %v910
        %v916 = vsel %vm915, %v910, %v914
        %v917 = vmul.f32 %v906, %v916
        %v918 = vmul.f32 %v909, %v916
        %v919 = vsub.f32 %v899, %v917
        %v920 = vsub.f32 %v900, %v918
        %v921 = vmul.f32 %v919, %v919
        %v922 = vmul.f32 %v920, %v920
        %v923 = vsel %vm903, %v921, 0.0
        %924 = vadd.xlane.f32.xlu0 %v923
        %v925 = vpop.xlane.xlu0 %924
        %v926 = vsel %vm903, %v922, 0.0
        %927 = vadd.xlane.f32.xlu0 %v926
        %v928 = vpop.xlane.xlu0 %927
        %v929 = vmul.f32 %v925, %v916
        %v930 = vmul.f32 %v928, %v916
        %v931 = vadd.f32 %v929, 1e-06
        %v932 = vadd.f32 %v930, 1e-06
        %v933 = vrsqrt.pop %v931
        %v934 = vmul.f32 %v933, %v931
        %v935 = vmul.f32 %v934, %v933
        %v936 = vmul.f32 0.5, %v935
        %v937 = vsub.f32 1.5, %v936
        %v938 = vmul.f32 %v933, %v937
        %vm939 = vweird.f32 %v931
        %vm940 = vweird.f32 %v933
        %vm941 = vmor %vm939, %vm940
        %v942 = vsel %vm941, %v933, %v938
        %v943 = vrsqrt.pop %v932
        %v944 = vmul.f32 %v943, %v932
        %v945 = vmul.f32 %v944, %v943
        %v946 = vmul.f32 0.5, %v945
        %v947 = vsub.f32 1.5, %v946
        %v948 = vmul.f32 %v943, %v947
        %vm949 = vweird.f32 %v932
        %vm950 = vweird.f32 %v943
        %vm951 = vmor %vm949, %vm950
        %v952 = vsel %vm951, %v943, %v948
        %v953 = vmul.f32 %v919, %v942
        %v954 = vmul.f32 %v920, %v952
        %v956 = vperm.slane %v901, 0
        %v958 = vmul.f32 %v953, %v956
        %v959 = vmul.f32 %v954, %v956
        %v961 = vperm.slane %v902, 0
        %v963 = vadd.f32 %v958, %v961
        %v964 = vadd.f32 %v959, %v961
        %v965 = vpack.c.bf16 %v964, %v963
        %v966 = vld [vmem:[%s785] sm:$0xf]
        %v967 = vld [vmem:[%s785 + $0x4] sm:$0xf]
        %v968 = vld [vmem:[%s785 + $0x8] sm:$0xf]
        %v969 = vld [vmem:[%s785 + $0xc] sm:$0xf]
        %v970 = vld [vmem:[%s788] sm:$0x1]
        %v972 = vperm.slane %v970, 0
        %v978 = vunpack.c.l.b16 %v966
        %v979 = vunpack.c.l.b16 %v967
        %v980 = vunpack.c.l.b16 %v968
        %v981 = vunpack.c.l.b16 %v969
        %v982 = vpack.c.b16 %v979, %v978
        %v983 = vpack.c.b16 %v981, %v980
        %v987 = vsel %vm903, %v965, 0
        %989 = vmatpush.bf16.msra.mxu0 0
        %990 = vmatpush.bf16.msra.mxu0 0
        %991 = vmatpush.bf16.msra.mxu0 0
        %992 = vmatpush.bf16.msra.mxu0 0
        %993 = vmatpush.bf16.msra.mxu0 0
        %994 = vmatpush.bf16.msra.mxu0 0
        %995 = vmatpush.bf16.msra.mxu0 %v983
        %996 = vmatpush.bf16.msra.mxu0 %v982
        %997 = vmatmul.bf16.gmra.mxu0 %v987
        %v998 = vpop.f32.mrf.mxu0
        %v999 = vadd.f32 %v972, %v998
        %v1000 = vpop.f32.mrf.mxu0
        %v1001 = vadd.f32 %v972, %v1000
        %1002 = vdwg.mxu0
        %v1003 = vld [vmem:[%s773] sm:$0x1]
        %v1004 = vld [vmem:[%s773 + $0x1] sm:$0x1]
        %v1007 = vperm.slane %v1003, 0
        %v1008 = vperm.slane %v1004, 0
        %v1011 = vpack.c.bf16 %v999, %v999
        %v1012 = vpack.c.bf16 %v1001, %v1001
        %v1014 = vunpack.c.l.b16 %v1011
        %v1015 = vpack.c.b16 %v1014, %v1014
        %1016 = vrot.lane.b32.xlu0 %v1015, 96
        %v1017 = vpop.permute.xlu0 %1016
        %vm1018 = vcmask 64512
        %v1020 = vsel %vm1018, %v1011, 0
        %v1023 = vsel %vm1018, %v1017, 0
        %1025 = vmatpush.bf16.xpose.msra.mxu0 0
        %1026 = vmatpush.bf16.xpose.msra.mxu0 0
        %1027 = vmatpush.bf16.xpose.msra.mxu0 0
        %1028 = vmatpush.bf16.xpose.msra.mxu0 0
        %1029 = vmatpush.bf16.xpose.msra.mxu0 0
        %1030 = vmatpush.bf16.xpose.msra.mxu0 0
        %1031 = vmatpush.bf16.xpose.msra.mxu0 0
        %1032 = vmatpush.bf16.xpose.msra.mxu0 %v1023
        %1033 = vmatmul.bf16.gmra.mxu0 %v1020
        %v1034 = vpop.f32.mrf.mxu0
        %v1035 = vadd.f32 0.0, %v1034
        %v1036 = vpop.f32.mrf.mxu0
        %1037 = vdwg.mxu0
        %v1039 = vunpack.c.l.b16 %v1012
        %v1040 = vpack.c.b16 %v1039, %v1039
        %1041 = vrot.lane.b32.xlu0 %v1040, 96
        %v1042 = vpop.permute.xlu0 %1041
        %v1044 = vsel %vm1018, %v1012, 0
        %v1047 = vsel %vm1018, %v1042, 0
        %1049 = vmatpush.bf16.xpose.msra.mxu0 0
        %1050 = vmatpush.bf16.xpose.msra.mxu0 0
        %1051 = vmatpush.bf16.xpose.msra.mxu0 0
        %1052 = vmatpush.bf16.xpose.msra.mxu0 0
        %1053 = vmatpush.bf16.xpose.msra.mxu0 0
        %1054 = vmatpush.bf16.xpose.msra.mxu0 0
        %1055 = vmatpush.bf16.xpose.msra.mxu0 0
        %1056 = vmatpush.bf16.xpose.msra.mxu0 %v1047
        %1057 = vmatmul.bf16.gmra.mxu0 %v1044
        %v1058 = vpop.f32.mrf.mxu0
        %v1059 = vadd.f32 0.0, %v1058
        %v1060 = vpop.f32.mrf.mxu0
        %1061 = vdwg.mxu0
        %v1062 = vmul.f32 %v1035, 0.35355338
        %v1063 = vmul.f32 %v1059, 0.35355338
        %v1064 = vadd.f32 %v1062, %v1007
        %v1065 = vadd.f32 %v1063, %v1008
        %v1066 = vsel %vm1018, %v1064, -inf
        %1067 = vmax.xlane.f32.xlu0 %v1066
        %v1068 = vpop.xlane.xlu0 %1067
        %v1069 = vsel %vm1018, %v1065, -inf
        %1070 = vmax.xlane.f32.xlu0 %v1069
        %v1071 = vpop.xlane.xlu0 %1070
        %v1072 = vsub.f32 %v1064, %v1068
        %v1073 = vsub.f32 %v1065, %v1071
        %v1074 = vmul.f32 %v1072, 1.442695
        %v1075 = vpow.pop %v1074
        %v1076 = vmul.f32 %v1073, 1.442695
        %v1077 = vpow.pop %v1076
        %v1078 = vsel %vm1018, %v1075, 0.0
        %1079 = vadd.xlane.f32.xlu0 %v1078
        %v1080 = vpop.xlane.xlu0 %1079
        %v1081 = vsel %vm1018, %v1077, 0.0
        %1082 = vadd.xlane.f32.xlu0 %v1081
        %v1083 = vpop.xlane.xlu0 %1082
        %v1084 = vrcp.pop %v1080
        %v1085 = vrcp.pop %v1083
        %v1086 = vmul.f32 %v1075, %v1084
        %v1087 = vmul.f32 %v1077, %v1085
        %v1088 = vpack.c.bf16 %v1086, %v1086
        %v1089 = vpack.c.bf16 %v1087, %v1087
        %1090 = vrot.lane.b32.xlu0 %v1015, 64
        %v1091 = vpop.permute.xlu0 %1090
        %v1093 = vsel %vm1018, %v1088, 0
        %vm1095 = vcmask 1043456
        %v1097 = vsel %vm1095, %v1091, 0
        %1099 = vmatpush.bf16.msra.mxu0 0
        %1100 = vmatpush.bf16.msra.mxu0 0
        %1101 = vmatpush.bf16.msra.mxu0 0
        %1102 = vmatpush.bf16.msra.mxu0 0
        %1103 = vmatpush.bf16.msra.mxu0 0
        %1104 = vmatpush.bf16.msra.mxu0 0
        %1105 = vmatpush.bf16.msra.mxu0 0
        %1106 = vmatpush.bf16.msra.mxu0 %v1097
        %1107 = vmatmul.bf16.gmra.mxu0 %v1093
        %v1108 = vpop.f32.mrf.mxu0
        %v1109 = vadd.f32 0.0, %v1108
        %v1110 = vpop.f32.mrf.mxu0
        %1111 = vdwg.mxu0
        %1112 = vrot.lane.b32.xlu0 %v1040, 64
        %v1113 = vpop.permute.xlu0 %1112
        %v1115 = vsel %vm1018, %v1089, 0
        %v1118 = vsel %vm1095, %v1113, 0
        %1120 = vmatpush.bf16.msra.mxu0 0
        %1121 = vmatpush.bf16.msra.mxu0 0
        %1122 = vmatpush.bf16.msra.mxu0 0
        %1123 = vmatpush.bf16.msra.mxu0 0
        %1124 = vmatpush.bf16.msra.mxu0 0
        %1125 = vmatpush.bf16.msra.mxu0 0
        %1126 = vmatpush.bf16.msra.mxu0 0
        %1127 = vmatpush.bf16.msra.mxu0 %v1118
        %1128 = vmatmul.bf16.gmra.mxu0 %v1115
        %v1129 = vpop.f32.mrf.mxu0
        %v1130 = vadd.f32 0.0, %v1129
        %v1131 = vpop.f32.mrf.mxu0
        %1132 = vdwg.mxu0
        %1133 = vrot.lane.b32.xlu0 %v1015, 120
        %v1134 = vpop.permute.xlu0 %1133
        %1135 = vrot.lane.b32.xlu0 %v1015, 88
        %v1136 = vpop.permute.xlu0 %1135
        %v1138 = vsel %vm1018, %v1134, 0
        %v1141 = vsel %vm1018, %v1136, 0
        %1143 = vmatpush.bf16.xpose.msra.mxu0 0
        %1144 = vmatpush.bf16.xpose.msra.mxu0 0
        %1145 = vmatpush.bf16.xpose.msra.mxu0 0
        %1146 = vmatpush.bf16.xpose.msra.mxu0 0
        %1147 = vmatpush.bf16.xpose.msra.mxu0 0
        %1148 = vmatpush.bf16.xpose.msra.mxu0 0
        %1149 = vmatpush.bf16.xpose.msra.mxu0 0
        %1150 = vmatpush.bf16.xpose.msra.mxu0 %v1141
        %1151 = vmatmul.bf16.gmra.mxu0 %v1138
        %v1152 = vpop.f32.mrf.mxu0
        %v1153 = vadd.f32 0.0, %v1152
        %v1154 = vpop.f32.mrf.mxu0
        %1155 = vdwg.mxu0
        %1156 = vrot.lane.b32.xlu0 %v1040, 120
        %v1157 = vpop.permute.xlu0 %1156
        %1158 = vrot.lane.b32.xlu0 %v1040, 88
        %v1159 = vpop.permute.xlu0 %1158
        %v1161 = vsel %vm1018, %v1157, 0
        %v1164 = vsel %vm1018, %v1159, 0
        %1166 = vmatpush.bf16.xpose.msra.mxu0 0
        %1167 = vmatpush.bf16.xpose.msra.mxu0 0
        %1168 = vmatpush.bf16.xpose.msra.mxu0 0
        %1169 = vmatpush.bf16.xpose.msra.mxu0 0
        %1170 = vmatpush.bf16.xpose.msra.mxu0 0
        %1171 = vmatpush.bf16.xpose.msra.mxu0 0
        %1172 = vmatpush.bf16.xpose.msra.mxu0 0
        %1173 = vmatpush.bf16.xpose.msra.mxu0 %v1164
        %1174 = vmatmul.bf16.gmra.mxu0 %v1161
        %v1175 = vpop.f32.mrf.mxu0
        %v1176 = vadd.f32 0.0, %v1175
        %v1177 = vpop.f32.mrf.mxu0
        %1178 = vdwg.mxu0
        %v1179 = vmul.f32 %v1153, 0.35355338
        %v1180 = vmul.f32 %v1176, 0.35355338
        %v1181 = vadd.f32 %v1179, %v1007
        %v1182 = vadd.f32 %v1180, %v1008
        %v1183 = vsel %vm1018, %v1181, -inf
        %1184 = vmax.xlane.f32.xlu0 %v1183
        %v1185 = vpop.xlane.xlu0 %1184
        %v1186 = vsel %vm1018, %v1182, -inf
        %1187 = vmax.xlane.f32.xlu0 %v1186
        %v1188 = vpop.xlane.xlu0 %1187
        %v1189 = vsub.f32 %v1181, %v1185
        %v1190 = vsub.f32 %v1182, %v1188
        %v1191 = vmul.f32 %v1189, 1.442695
        %v1192 = vpow.pop %v1191
        %v1193 = vmul.f32 %v1190, 1.442695
        %v1194 = vpow.pop %v1193
        %v1195 = vsel %vm1018, %v1192, 0.0
        %1196 = vadd.xlane.f32.xlu0 %v1195
        %v1197 = vpop.xlane.xlu0 %1196
        %v1198 = vsel %vm1018, %v1194, 0.0
        %1199 = vadd.xlane.f32.xlu0 %v1198
        %v1200 = vpop.xlane.xlu0 %1199
        %v1201 = vrcp.pop %v1197
        %v1202 = vrcp.pop %v1200
        %v1203 = vmul.f32 %v1192, %v1201
        %v1204 = vmul.f32 %v1194, %v1202
        %v1205 = vpack.c.bf16 %v1203, %v1203
        %v1206 = vpack.c.bf16 %v1204, %v1204
        %1207 = vrot.lane.b32.xlu0 %v1015, 56
        %v1208 = vpop.permute.xlu0 %1207
        %v1210 = vsel %vm1018, %v1205, 0
        %v1213 = vsel %vm1095, %v1208, 0
        %1215 = vmatpush.bf16.msra.mxu0 0
        %1216 = vmatpush.bf16.msra.mxu0 0
        %1217 = vmatpush.bf16.msra.mxu0 0
        %1218 = vmatpush.bf16.msra.mxu0 0
        %1219 = vmatpush.bf16.msra.mxu0 0
        %1220 = vmatpush.bf16.msra.mxu0 0
        %1221 = vmatpush.bf16.msra.mxu0 0
        %1222 = vmatpush.bf16.msra.mxu0 %v1213
        %1223 = vmatmul.bf16.gmra.mxu0 %v1210
        %v1224 = vpop.f32.mrf.mxu0
        %v1225 = vadd.f32 0.0, %v1224
        %v1226 = vpop.f32.mrf.mxu0
        %1227 = vdwg.mxu0
        %1228 = vrot.lane.b32.xlu0 %v1040, 56
        %v1229 = vpop.permute.xlu0 %1228
        %v1231 = vsel %vm1018, %v1206, 0
        %v1234 = vsel %vm1095, %v1229, 0
        %1236 = vmatpush.bf16.msra.mxu0 0
        %1237 = vmatpush.bf16.msra.mxu0 0
        %1238 = vmatpush.bf16.msra.mxu0 0
        %1239 = vmatpush.bf16.msra.mxu0 0
        %1240 = vmatpush.bf16.msra.mxu0 0
        %1241 = vmatpush.bf16.msra.mxu0 0
        %1242 = vmatpush.bf16.msra.mxu0 0
        %1243 = vmatpush.bf16.msra.mxu0 %v1234
        %1244 = vmatmul.bf16.gmra.mxu0 %v1231
        %v1245 = vpop.f32.mrf.mxu0
        %v1246 = vadd.f32 0.0, %v1245
        %v1247 = vpop.f32.mrf.mxu0
        %1248 = vdwg.mxu0
        %1249 = vrot.lane.b32.xlu0 %v1015, 112
        %v1250 = vpop.permute.xlu0 %1249
        %1251 = vrot.lane.b32.xlu0 %v1015, 80
        %v1252 = vpop.permute.xlu0 %1251
        %v1254 = vsel %vm1018, %v1250, 0
        %v1257 = vsel %vm1018, %v1252, 0
        %1259 = vmatpush.bf16.xpose.msra.mxu0 0
        %1260 = vmatpush.bf16.xpose.msra.mxu0 0
        %1261 = vmatpush.bf16.xpose.msra.mxu0 0
        %1262 = vmatpush.bf16.xpose.msra.mxu0 0
        %1263 = vmatpush.bf16.xpose.msra.mxu0 0
        %1264 = vmatpush.bf16.xpose.msra.mxu0 0
        %1265 = vmatpush.bf16.xpose.msra.mxu0 0
        %1266 = vmatpush.bf16.xpose.msra.mxu0 %v1257
        %1267 = vmatmul.bf16.gmra.mxu0 %v1254
        %v1268 = vpop.f32.mrf.mxu0
        %v1269 = vadd.f32 0.0, %v1268
        %v1270 = vpop.f32.mrf.mxu0
        %1271 = vdwg.mxu0
        %1272 = vrot.lane.b32.xlu0 %v1040, 112
        %v1273 = vpop.permute.xlu0 %1272
        %1274 = vrot.lane.b32.xlu0 %v1040, 80
        %v1275 = vpop.permute.xlu0 %1274
        %v1277 = vsel %vm1018, %v1273, 0
        %v1280 = vsel %vm1018, %v1275, 0
        %1282 = vmatpush.bf16.xpose.msra.mxu0 0
        %1283 = vmatpush.bf16.xpose.msra.mxu0 0
        %1284 = vmatpush.bf16.xpose.msra.mxu0 0
        %1285 = vmatpush.bf16.xpose.msra.mxu0 0
        %1286 = vmatpush.bf16.xpose.msra.mxu0 0
        %1287 = vmatpush.bf16.xpose.msra.mxu0 0
        %1288 = vmatpush.bf16.xpose.msra.mxu0 0
        %1289 = vmatpush.bf16.xpose.msra.mxu0 %v1280
        %1290 = vmatmul.bf16.gmra.mxu0 %v1277
        %v1291 = vpop.f32.mrf.mxu0
        %v1292 = vadd.f32 0.0, %v1291
        %v1293 = vpop.f32.mrf.mxu0
        %1294 = vdwg.mxu0
        %v1295 = vmul.f32 %v1269, 0.35355338
        %v1296 = vmul.f32 %v1292, 0.35355338
        %v1297 = vadd.f32 %v1295, %v1007
        %v1298 = vadd.f32 %v1296, %v1008
        %v1299 = vsel %vm1018, %v1297, -inf
        %1300 = vmax.xlane.f32.xlu0 %v1299
        %v1301 = vpop.xlane.xlu0 %1300
        %v1302 = vsel %vm1018, %v1298, -inf
        %1303 = vmax.xlane.f32.xlu0 %v1302
        %v1304 = vpop.xlane.xlu0 %1303
        %v1305 = vsub.f32 %v1297, %v1301
        %v1306 = vsub.f32 %v1298, %v1304
        %v1307 = vmul.f32 %v1305, 1.442695
        %v1308 = vpow.pop %v1307
        %v1309 = vmul.f32 %v1306, 1.442695
        %v1310 = vpow.pop %v1309
        %v1311 = vsel %vm1018, %v1308, 0.0
        %1312 = vadd.xlane.f32.xlu0 %v1311
        %v1313 = vpop.xlane.xlu0 %1312
        %v1314 = vsel %vm1018, %v1310, 0.0
        %1315 = vadd.xlane.f32.xlu0 %v1314
        %v1316 = vpop.xlane.xlu0 %1315
        %v1317 = vrcp.pop %v1313
        %v1318 = vrcp.pop %v1316
        %v1319 = vmul.f32 %v1308, %v1317
        %v1320 = vmul.f32 %v1310, %v1318
        %v1321 = vpack.c.bf16 %v1319, %v1319
        %v1322 = vpack.c.bf16 %v1320, %v1320
        %1323 = vrot.lane.b32.xlu0 %v1015, 48
        %v1324 = vpop.permute.xlu0 %1323
        %v1326 = vsel %vm1018, %v1321, 0
        %v1329 = vsel %vm1095, %v1324, 0
        %1331 = vmatpush.bf16.msra.mxu0 0
        %1332 = vmatpush.bf16.msra.mxu0 0
        %1333 = vmatpush.bf16.msra.mxu0 0
        %1334 = vmatpush.bf16.msra.mxu0 0
        %1335 = vmatpush.bf16.msra.mxu0 0
        %1336 = vmatpush.bf16.msra.mxu0 0
        %1337 = vmatpush.bf16.msra.mxu0 0
        %1338 = vmatpush.bf16.msra.mxu0 %v1329
        %1339 = vmatmul.bf16.gmra.mxu0 %v1326
        %v1340 = vpop.f32.mrf.mxu0
        %v1341 = vadd.f32 0.0, %v1340
        %v1342 = vpop.f32.mrf.mxu0
        %1343 = vdwg.mxu0
        %1344 = vrot.lane.b32.xlu0 %v1040, 48
        %v1345 = vpop.permute.xlu0 %1344
        %v1347 = vsel %vm1018, %v1322, 0
        %v1350 = vsel %vm1095, %v1345, 0
        %1352 = vmatpush.bf16.msra.mxu0 0
        %1353 = vmatpush.bf16.msra.mxu0 0
        %1354 = vmatpush.bf16.msra.mxu0 0
        %1355 = vmatpush.bf16.msra.mxu0 0
        %1356 = vmatpush.bf16.msra.mxu0 0
        %1357 = vmatpush.bf16.msra.mxu0 0
        %1358 = vmatpush.bf16.msra.mxu0 0
        %1359 = vmatpush.bf16.msra.mxu0 %v1350
        %1360 = vmatmul.bf16.gmra.mxu0 %v1347
        %v1361 = vpop.f32.mrf.mxu0
        %v1362 = vadd.f32 0.0, %v1361
        %v1363 = vpop.f32.mrf.mxu0
        %1364 = vdwg.mxu0
        %1365 = vrot.lane.b32.xlu0 %v1015, 104
        %v1366 = vpop.permute.xlu0 %1365
        %1367 = vrot.lane.b32.xlu0 %v1015, 72
        %v1368 = vpop.permute.xlu0 %1367
        %v1370 = vsel %vm1018, %v1366, 0
        %v1373 = vsel %vm1018, %v1368, 0
        %1375 = vmatpush.bf16.xpose.msra.mxu0 0
        %1376 = vmatpush.bf16.xpose.msra.mxu0 0
        %1377 = vmatpush.bf16.xpose.msra.mxu0 0
        %1378 = vmatpush.bf16.xpose.msra.mxu0 0
        %1379 = vmatpush.bf16.xpose.msra.mxu0 0
        %1380 = vmatpush.bf16.xpose.msra.mxu0 0
        %1381 = vmatpush.bf16.xpose.msra.mxu0 0
        %1382 = vmatpush.bf16.xpose.msra.mxu0 %v1373
        %1383 = vmatmul.bf16.gmra.mxu0 %v1370
        %v1384 = vpop.f32.mrf.mxu0
        %v1385 = vadd.f32 0.0, %v1384
        %v1386 = vpop.f32.mrf.mxu0
        %1387 = vdwg.mxu0
        %1388 = vrot.lane.b32.xlu0 %v1040, 104
        %v1389 = vpop.permute.xlu0 %1388
        %1390 = vrot.lane.b32.xlu0 %v1040, 72
        %v1391 = vpop.permute.xlu0 %1390
        %v1393 = vsel %vm1018, %v1389, 0
        %v1396 = vsel %vm1018, %v1391, 0
        %1398 = vmatpush.bf16.xpose.msra.mxu0 0
        %1399 = vmatpush.bf16.xpose.msra.mxu0 0
        %1400 = vmatpush.bf16.xpose.msra.mxu0 0
        %1401 = vmatpush.bf16.xpose.msra.mxu0 0
        %1402 = vmatpush.bf16.xpose.msra.mxu0 0
        %1403 = vmatpush.bf16.xpose.msra.mxu0 0
        %1404 = vmatpush.bf16.xpose.msra.mxu0 0
        %1405 = vmatpush.bf16.xpose.msra.mxu0 %v1396
        %1406 = vmatmul.bf16.gmra.mxu0 %v1393
        %v1407 = vpop.f32.mrf.mxu0
        %v1408 = vadd.f32 0.0, %v1407
        %v1409 = vpop.f32.mrf.mxu0
        %1410 = vdwg.mxu0
        %v1411 = vmul.f32 %v1385, 0.35355338
        %v1412 = vmul.f32 %v1408, 0.35355338
        %v1413 = vadd.f32 %v1411, %v1007
        %v1414 = vadd.f32 %v1412, %v1008
        %v1415 = vsel %vm1018, %v1413, -inf
        %1416 = vmax.xlane.f32.xlu0 %v1415
        %v1417 = vpop.xlane.xlu0 %1416
        %v1418 = vsel %vm1018, %v1414, -inf
        %1419 = vmax.xlane.f32.xlu0 %v1418
        %v1420 = vpop.xlane.xlu0 %1419
        %v1421 = vsub.f32 %v1413, %v1417
        %v1422 = vsub.f32 %v1414, %v1420
        %v1423 = vmul.f32 %v1421, 1.442695
        %v1424 = vpow.pop %v1423
        %v1425 = vmul.f32 %v1422, 1.442695
        %v1426 = vpow.pop %v1425
        %v1427 = vsel %vm1018, %v1424, 0.0
        %1428 = vadd.xlane.f32.xlu0 %v1427
        %v1429 = vpop.xlane.xlu0 %1428
        %v1430 = vsel %vm1018, %v1426, 0.0
        %1431 = vadd.xlane.f32.xlu0 %v1430
        %v1432 = vpop.xlane.xlu0 %1431
        %v1433 = vrcp.pop %v1429
        %v1434 = vrcp.pop %v1432
        %v1435 = vmul.f32 %v1424, %v1433
        %v1436 = vmul.f32 %v1426, %v1434
        %v1437 = vpack.c.bf16 %v1435, %v1435
        %v1438 = vpack.c.bf16 %v1436, %v1436
        %1439 = vrot.lane.b32.xlu0 %v1015, 40
        %v1440 = vpop.permute.xlu0 %1439
        %v1442 = vsel %vm1018, %v1437, 0
        %v1445 = vsel %vm1095, %v1440, 0
        %1447 = vmatpush.bf16.msra.mxu0 0
        %1448 = vmatpush.bf16.msra.mxu0 0
        %1449 = vmatpush.bf16.msra.mxu0 0
        %1450 = vmatpush.bf16.msra.mxu0 0
        %1451 = vmatpush.bf16.msra.mxu0 0
        %1452 = vmatpush.bf16.msra.mxu0 0
        %1453 = vmatpush.bf16.msra.mxu0 0
        %1454 = vmatpush.bf16.msra.mxu0 %v1445
        %1455 = vmatmul.bf16.gmra.mxu0 %v1442
        %v1456 = vpop.f32.mrf.mxu0
        %v1457 = vadd.f32 0.0, %v1456
        %v1458 = vpop.f32.mrf.mxu0
        %1459 = vdwg.mxu0
        %1460 = vrot.lane.b32.xlu0 %v1040, 40
        %v1461 = vpop.permute.xlu0 %1460
        %v1463 = vsel %vm1018, %v1438, 0
        %v1466 = vsel %vm1095, %v1461, 0
        %1468 = vmatpush.bf16.msra.mxu0 0
        %1469 = vmatpush.bf16.msra.mxu0 0
        %1470 = vmatpush.bf16.msra.mxu0 0
        %1471 = vmatpush.bf16.msra.mxu0 0
        %1472 = vmatpush.bf16.msra.mxu0 0
        %1473 = vmatpush.bf16.msra.mxu0 0
        %1474 = vmatpush.bf16.msra.mxu0 0
        %1475 = vmatpush.bf16.msra.mxu0 %v1466
        %1476 = vmatmul.bf16.gmra.mxu0 %v1463
        %v1477 = vpop.f32.mrf.mxu0
        %v1478 = vadd.f32 0.0, %v1477
        %v1479 = vpop.f32.mrf.mxu0
        %1480 = vdwg.mxu0
        %1483 = vrot.lane.b32.xlu0 %v1225, 8
        %v1484 = vpop.permute.xlu0 %1483
        %1485 = vrot.lane.b32.xlu0 %v1246, 8
        %v1486 = vpop.permute.xlu0 %1485
        %1491 = vrot.lane.b32.xlu0 %v1341, 16
        %v1492 = vpop.permute.xlu0 %1491
        %1493 = vrot.lane.b32.xlu0 %v1362, 16
        %v1494 = vpop.permute.xlu0 %1493
        %1499 = vrot.lane.b32.xlu0 %v1457, 24
        %v1500 = vpop.permute.xlu0 %1499
        %1501 = vrot.lane.b32.xlu0 %v1478, 24
        %v1502 = vpop.permute.xlu0 %1501
        %v1505 = vsel %vm1018, %v1109, %v1484
        %v1506 = vsel %vm1018, %v1130, %v1486
        %vm1507 = vcmask 130048
        %v1508 = vsel %vm1507, %v1505, %v1492
        %v1509 = vsel %vm1507, %v1506, %v1494
        %vm1510 = vcmask 195584
        %v1511 = vsel %vm1510, %v1508, %v1500
        %v1512 = vsel %vm1510, %v1509, %v1502
        %v1513 = vpack.c.bf16 %v1512, %v1511
        %v1514 = vld [vmem:[%s793] sm:$0xf]
        %v1515 = vld [vmem:[%s793 + $0x4] sm:$0xf]
        %v1516 = vld [vmem:[%s793 + $0x8] sm:$0xf]
        %v1517 = vld [vmem:[%s793 + $0xc] sm:$0xf]
        %v1518 = vld [vmem:[%s796] sm:$0x1]
        %v1520 = vperm.slane %v1518, 0
        %v1526 = vunpack.c.l.b16 %v1514
        %v1527 = vunpack.c.l.b16 %v1515
        %v1528 = vunpack.c.l.b16 %v1516
        %v1529 = vunpack.c.l.b16 %v1517
        %v1530 = vpack.c.b16 %v1527, %v1526
        %v1531 = vpack.c.b16 %v1529, %v1528
        %v1535 = vsel %vm903, %v1513, 0
        %1537 = vmatpush.bf16.msra.mxu0 0
        %1538 = vmatpush.bf16.msra.mxu0 0
        %1539 = vmatpush.bf16.msra.mxu0 0
        %1540 = vmatpush.bf16.msra.mxu0 0
        %1541 = vmatpush.bf16.msra.mxu0 0
        %1542 = vmatpush.bf16.msra.mxu0 0
        %1543 = vmatpush.bf16.msra.mxu0 %v1531
        %1544 = vmatpush.bf16.msra.mxu0 %v1530
        %1545 = vmatmul.bf16.gmra.mxu0 %v1535
        %v1546 = vpop.f32.mrf.mxu0
        %v1547 = vadd.f32 %v1520, %v1546
        %v1548 = vpop.f32.mrf.mxu0
        %v1549 = vadd.f32 %v1520, %v1548
        %1550 = vdwg.mxu0
        %v1551 = vadd.f32 %v899, %v1547
        %v1552 = vadd.f32 %v900, %v1549
        %v1553 = vld [vmem:[%s799] sm:$0x1]
        %v1554 = vld [vmem:[%s802] sm:$0x1]
        %v1555 = vsel %vm903, %v1551, 0.0
        %1556 = vadd.xlane.f32.xlu0 %v1555
        %v1557 = vpop.xlane.xlu0 %1556
        %v1558 = vsel %vm903, %v1552, 0.0
        %1559 = vadd.xlane.f32.xlu0 %v1558
        %v1560 = vpop.xlane.xlu0 %1559
        %v1561 = vmul.f32 %v1557, %v916
        %v1562 = vmul.f32 %v1560, %v916
        %v1563 = vsub.f32 %v1551, %v1561
        %v1564 = vsub.f32 %v1552, %v1562
        %v1565 = vmul.f32 %v1563, %v1563
        %v1566 = vmul.f32 %v1564, %v1564
        %v1567 = vsel %vm903, %v1565, 0.0
        %1568 = vadd.xlane.f32.xlu0 %v1567
        %v1569 = vpop.xlane.xlu0 %1568
        %v1570 = vsel %vm903, %v1566, 0.0
        %1571 = vadd.xlane.f32.xlu0 %v1570
        %v1572 = vpop.xlane.xlu0 %1571
        %v1573 = vmul.f32 %v1569, %v916
        %v1574 = vmul.f32 %v1572, %v916
        %v1575 = vadd.f32 %v1573, 1e-06
        %v1576 = vadd.f32 %v1574, 1e-06
        %v1577 = vrsqrt.pop %v1575
        %v1578 = vmul.f32 %v1577, %v1575
        %v1579 = vmul.f32 %v1578, %v1577
        %v1580 = vmul.f32 0.5, %v1579
        %v1581 = vsub.f32 1.5, %v1580
        %v1582 = vmul.f32 %v1577, %v1581
        %vm1583 = vweird.f32 %v1575
        %vm1584 = vweird.f32 %v1577
        %vm1585 = vmor %vm1583, %vm1584
        %v1586 = vsel %vm1585, %v1577, %v1582
        %v1587 = vrsqrt.pop %v1576
        %v1588 = vmul.f32 %v1587, %v1576
        %v1589 = vmul.f32 %v1588, %v1587
        %v1590 = vmul.f32 0.5, %v1589
        %v1591 = vsub.f32 1.5, %v1590
        %v1592 = vmul.f32 %v1587, %v1591
        %vm1593 = vweird.f32 %v1576
        %vm1594 = vweird.f32 %v1587
        %vm1595 = vmor %vm1593, %vm1594
        %v1596 = vsel %vm1595, %v1587, %v1592
        %v1597 = vmul.f32 %v1563, %v1586
        %v1598 = vmul.f32 %v1564, %v1596
        %v1600 = vperm.slane %v1553, 0
        %v1602 = vmul.f32 %v1597, %v1600
        %v1603 = vmul.f32 %v1598, %v1600
        %v1605 = vperm.slane %v1554, 0
        %v1607 = vadd.f32 %v1602, %v1605
        %v1608 = vadd.f32 %v1603, %v1605
        %v1609 = vpack.c.bf16 %v1608, %v1607
        %v1610 = vld [vmem:[%s807] sm:$0xf]
        %v1611 = vld [vmem:[%s807 + $0x4] sm:$0xf]
        %v1612 = vld [vmem:[%s807 + $0x8] sm:$0xf]
        %v1613 = vld [vmem:[%s807 + $0xc] sm:$0xf]
        %v1614 = vld [vmem:[%s810] sm:$0x1]
        %v1616 = vperm.slane %v1614, 0
        %v1622 = vunpack.c.l.b16 %v1610
        %v1623 = vunpack.c.l.b16 %v1611
        %v1624 = vunpack.c.l.b16 %v1612
        %v1625 = vunpack.c.l.b16 %v1613
        %v1626 = vpack.c.b16 %v1623, %v1622
        %v1627 = vpack.c.b16 %v1625, %v1624
        %v1631 = vsel %vm903, %v1609, 0
        %1633 = vmatpush.bf16.msra.mxu0 0
        %1634 = vmatpush.bf16.msra.mxu0 0
        %1635 = vmatpush.bf16.msra.mxu0 0
        %1636 = vmatpush.bf16.msra.mxu0 0
        %1637 = vmatpush.bf16.msra.mxu0 0
        %1638 = vmatpush.bf16.msra.mxu0 0
        %1639 = vmatpush.bf16.msra.mxu0 %v1627
        %1640 = vmatpush.bf16.msra.mxu0 %v1626
        %1641 = vmatmul.bf16.gmra.mxu0 %v1631
        %v1642 = vpop.f32.mrf.mxu0
        %v1643 = vadd.f32 %v1616, %v1642
        %v1644 = vpop.f32.mrf.mxu0
        %v1645 = vadd.f32 %v1616, %v1644
        %1646 = vdwg.mxu0
        %v1647 = vmul.f32 %v1643, 0.5
        %v1648 = vmul.f32 %v1645, 0.5
        %v1649 = vmul.f32 %v1643, 0.70710677
        %v1650 = vmul.f32 %v1645, 0.70710677
        %v1651 = vand.u32 2147483647, %v1649
        %v1652 = vand.u32 2147483647, %v1650
        %v1653 = vmul.f32 %v1651, 0.3275911
        %v1654 = vmul.f32 %v1652, 0.3275911
        %v1655 = vadd.f32 %v1653, 1.0
        %v1656 = vadd.f32 %v1654, 1.0
        %v1657 = vrcp.pop %v1655
        %v1658 = vmul.f32 %v1655, %v1657
        %v1659 = vsub.f32 1.0, %v1658
        %v1660 = vmul.f32 %v1657, %v1659
        %v1661 = vadd.f32 %v1657, %v1660
        %vm1662 = vweird.f32 %v1655
        %vm1663 = vweird.f32 %v1657
        %vm1664 = vmor %vm1662, %vm1663
        %v1665 = vsel %vm1664, %v1657, %v1661
        %v1666 = vand.u32 2147483647, %v1655
        %vm1667 = vcmp.eq.f32.partialorder %v1666, 8.507059e+37
        %v1668 = vand.u32 %v1655, 2147483648
        %v1669 = vor.u32 1.1754944e-38, %v1668
        %v1670 = vsel %vm1667, %v1669, %v1665
        %v1671 = vmul.f32 1.0, %v1670
        %v1672 = vrcp.pop %v1656
        %v1673 = vmul.f32 %v1656, %v1672
        %v1674 = vsub.f32 1.0, %v1673
        %v1675 = vmul.f32 %v1672, %v1674
        %v1676 = vadd.f32 %v1672, %v1675
        %vm1677 = vweird.f32 %v1656
        %vm1678 = vweird.f32 %v1672
        %vm1679 = vmor %vm1677, %vm1678
        %v1680 = vsel %vm1679, %v1672, %v1676
        %v1681 = vand.u32 2147483647, %v1656
        %vm1682 = vcmp.eq.f32.partialorder %v1681, 8.507059e+37
        %v1683 = vand.u32 %v1656, 2147483648
        %v1684 = vor.u32 1.1754944e-38, %v1683
        %v1685 = vsel %vm1682, %v1684, %v1680
        %v1686 = vmul.f32 1.0, %v1685
        %v1687 = vmul.f32 %v1671, 1.0614054
        %v1688 = vmul.f32 %v1686, 1.0614054
        %v1689 = vadd.f32 %v1687, -1.4531521
        %v1690 = vadd.f32 %v1688, -1.4531521
        %v1691 = vmul.f32 %v1689, %v1671
        %v1692 = vmul.f32 %v1690, %v1686
        %v1693 = vadd.f32 %v1691, 1.4214138
        %v1694 = vadd.f32 %v1692, 1.4214138
        %v1695 = vmul.f32 %v1693, %v1671
        %v1696 = vmul.f32 %v1694, %v1686
        %v1697 = vadd.f32 %v1695, -0.28449672
        %v1698 = vadd.f32 %v1696, -0.28449672
        %v1699 = vmul.f32 %v1697, %v1671
        %v1700 = vmul.f32 %v1698, %v1686
        %v1701 = vadd.f32 %v1699, 0.2548296
        %v1702 = vadd.f32 %v1700, 0.2548296
        %v1703 = vmul.f32 %v1701, %v1671
        %v1704 = vmul.f32 %v1702, %v1686
        %v1705 = vsub.f32 0.0, %v1651
        %v1706 = vsub.f32 0.0, %v1652
        %v1707 = vmul.f32 %v1705, %v1651
        %v1708 = vmul.f32 %v1706, %v1652
        %v1709 = vmul.f32 %v1707, 1.442695
        %v1710 = vpow.pop %v1709
        %v1711 = vmul.f32 %v1708, 1.442695
        %v1712 = vpow.pop %v1711
        %v1713 = vmul.f32 %v1703, %v1710
        %v1714 = vmul.f32 %v1704, %v1712
        %v1715 = vsub.f32 1.0, %v1713
        %v1716 = vsub.f32 1.0, %v1714
        %vm1717 = vcmp.ge.f32.partialorder %v1649, 0.0
        %vm1718 = vcmp.ge.f32.partialorder %v1650, 0.0
        %v1719 = vsub.f32 0.0, %v1715
        %v1720 = vsub.f32 0.0, %v1716
        %v1721 = vsel %vm1717, %v1715, %v1719
        %v1722 = vsel %vm1718, %v1716, %v1720
        %v1723 = vadd.f32 %v1721, 1.0
        %v1724 = vadd.f32 %v1722, 1.0
        %v1725 = vmul.f32 %v1647, %v1723
        %v1726 = vmul.f32 %v1648, %v1724
        %v1727 = vpack.c.bf16 %v1726, %v1725
        %v1728 = vld [vmem:[%s815] sm:$0xf]
        %v1729 = vld [vmem:[%s815 + $0x4] sm:$0xf]
        %v1730 = vld [vmem:[%s815 + $0x8] sm:$0xf]
        %v1731 = vld [vmem:[%s815 + $0xc] sm:$0xf]
        %v1732 = vld [vmem:[%s815 + $0x10] sm:$0xf]
        %v1733 = vld [vmem:[%s815 + $0x14] sm:$0xf]
        %v1734 = vld [vmem:[%s815 + $0x18] sm:$0xf]
        %v1735 = vld [vmem:[%s815 + $0x1c] sm:$0xf]
        %v1736 = vld [vmem:[%s815 + $0x20] sm:$0xf]
        %v1737 = vld [vmem:[%s815 + $0x24] sm:$0xf]
        %v1738 = vld [vmem:[%s815 + $0x28] sm:$0xf]
        %v1739 = vld [vmem:[%s815 + $0x2c] sm:$0xf]
        %v1740 = vld [vmem:[%s815 + $0x30] sm:$0xf]
        %v1741 = vld [vmem:[%s815 + $0x34] sm:$0xf]
        %v1742 = vld [vmem:[%s815 + $0x38] sm:$0xf]
        %v1743 = vld [vmem:[%s815 + $0x3c] sm:$0xf]
        %v1744 = vld [vmem:[%s818] sm:$0x1]
        %v1746 = vperm.slane %v1744, 0
        %v1764 = vunpack.c.l.b16 %v1728
        %v1765 = vunpack.c.l.b16 %v1729
        %v1766 = vunpack.c.l.b16 %v1730
        %v1767 = vunpack.c.l.b16 %v1731
        %v1768 = vunpack.c.l.b16 %v1732
        %v1769 = vunpack.c.l.b16 %v1733
        %v1770 = vunpack.c.l.b16 %v1734
        %v1771 = vunpack.c.l.b16 %v1735
        %v1772 = vunpack.c.l.b16 %v1736
        %v1773 = vunpack.c.l.b16 %v1737
        %v1774 = vunpack.c.l.b16 %v1738
        %v1775 = vunpack.c.l.b16 %v1739
        %v1776 = vunpack.c.l.b16 %v1740
        %v1777 = vunpack.c.l.b16 %v1741
        %v1778 = vunpack.c.l.b16 %v1742
        %v1779 = vunpack.c.l.b16 %v1743
        %v1780 = vpack.c.b16 %v1765, %v1764
        %v1781 = vpack.c.b16 %v1767, %v1766
        %v1782 = vpack.c.b16 %v1769, %v1768
        %v1783 = vpack.c.b16 %v1771, %v1770
        %v1784 = vpack.c.b16 %v1773, %v1772
        %v1785 = vpack.c.b16 %v1775, %v1774
        %v1786 = vpack.c.b16 %v1777, %v1776
        %v1787 = vpack.c.b16 %v1779, %v1778
        %1796 = vmatpush.bf16.msra.mxu0 %v1787
        %1797 = vmatpush.bf16.msra.mxu0 %v1786
        %1798 = vmatpush.bf16.msra.mxu0 %v1785
        %1799 = vmatpush.bf16.msra.mxu0 %v1784
        %1800 = vmatpush.bf16.msra.mxu0 %v1783
        %1801 = vmatpush.bf16.msra.mxu0 %v1782
        %1802 = vmatpush.bf16.msra.mxu0 %v1781
        %1803 = vmatpush.bf16.msra.mxu0 %v1780
        %1804 = vmatmul.bf16.gmra.mxu0 %v1727
        %v1805 = vpop.f32.mrf.mxu0
        %v1806 = vadd.f32 %v1746, %v1805
        %v1807 = vpop.f32.mrf.mxu0
        %v1808 = vadd.f32 %v1746, %v1807
        %1809 = vdwg.mxu0
        %v1810 = vadd.f32 %v1551, %v1806
        %v1811 = vadd.f32 %v1552, %v1808
        %1812 = vst.msk [vmem:[#allocation2] sm:$0xff] %vm903, %v1810
        %1813 = vst.msk [vmem:[#allocation2 + $0x8] sm:$0xff] %vm903, %v1811
        %p1814 = scmp.eq.s32.totalorder %s36, 1
        // Predicated region
        $region101: #{tpu_custom_call.1} parent=95 // pred_check
          %p1815 = pneg %p1814
        $region102: #{tpu_custom_call.1} parent=95 // pred_check_branch
          %1817 = sbr.rel (%p1815) target = $region104
        $region103: #{tpu_custom_call.1} parent=95 // pred_region
          %v1818 = vld [vmem:[%s5] sm:$0x1]
          %v1819 = vld [vmem:[%s6] sm:$0x1]
          %v1820 = vsel %vm903, %v1810, 0.0
          %1821 = vadd.xlane.f32.xlu0 %v1820
          %v1822 = vpop.xlane.xlu0 %1821
          %v1823 = vsel %vm903, %v1811, 0.0
          %1824 = vadd.xlane.f32.xlu0 %v1823
          %v1825 = vpop.xlane.xlu0 %1824
          %v1826 = vmul.f32 %v1822, %v916
          %v1827 = vmul.f32 %v1825, %v916
          %v1828 = vsub.f32 %v1810, %v1826
          %v1829 = vsub.f32 %v1811, %v1827
          %v1830 = vmul.f32 %v1828, %v1828
          %v1831 = vmul.f32 %v1829, %v1829
          %v1832 = vsel %vm903, %v1830, 0.0
          %1833 = vadd.xlane.f32.xlu0 %v1832
          %v1834 = vpop.xlane.xlu0 %1833
          %v1835 = vsel %vm903, %v1831, 0.0
          %1836 = vadd.xlane.f32.xlu0 %v1835
          %v1837 = vpop.xlane.xlu0 %1836
          %v1838 = vmul.f32 %v1834, %v916
          %v1839 = vmul.f32 %v1837, %v916
          %v1840 = vadd.f32 %v1838, 1e-06
          %v1841 = vadd.f32 %v1839, 1e-06
          %v1842 = vrsqrt.pop %v1840
          %v1843 = vmul.f32 %v1842, %v1840
          %v1844 = vmul.f32 %v1843, %v1842
          %v1845 = vmul.f32 0.5, %v1844
          %v1846 = vsub.f32 1.5, %v1845
          %v1847 = vmul.f32 %v1842, %v1846
          %vm1848 = vweird.f32 %v1840
          %vm1849 = vweird.f32 %v1842
          %vm1850 = vmor %vm1848, %vm1849
          %v1851 = vsel %vm1850, %v1842, %v1847
          %v1852 = vrsqrt.pop %v1841
          %v1853 = vmul.f32 %v1852, %v1841
          %v1854 = vmul.f32 %v1853, %v1852
          %v1855 = vmul.f32 0.5, %v1854
          %v1856 = vsub.f32 1.5, %v1855
          %v1857 = vmul.f32 %v1852, %v1856
          %vm1858 = vweird.f32 %v1841
          %vm1859 = vweird.f32 %v1852
          %vm1860 = vmor %vm1858, %vm1859
          %v1861 = vsel %vm1860, %v1852, %v1857
          %v1862 = vmul.f32 %v1828, %v1851
          %v1863 = vmul.f32 %v1829, %v1861
          %v1865 = vperm.slane %v1818, 0
          %v1867 = vmul.f32 %v1862, %v1865
          %v1868 = vmul.f32 %v1863, %v1865
          %v1870 = vperm.slane %v1819, 0
          %v1872 = vadd.f32 %v1867, %v1870
          %v1873 = vadd.f32 %v1868, %v1870
          %1874 = vst.msk [vmem:[#allocation3] sm:$0xff] %vm903, %v1872
          %1875 = vst.msk [vmem:[#allocation3 + $0x8] sm:$0xff] %vm903, %v1873
        $region104: #{tpu_custom_call.1} parent=95 // pred_fallthru
          _
        // Predicated region
        $region105: #{tpu_custom_call.1} parent=95 // pred_check
          %p1876 = pneg %p530
        $region106: #{tpu_custom_call.1} parent=95 // pred_check_branch
          %1878 = sbr.rel (%p1876) target = $region108
        $region107: #{tpu_custom_call.1} parent=95 // pred_region
          %s1879 = smul.u32 2, %s35
          %1881 = vsyncadd [#allocation4], 0
          %s1882 = smul.addr %s1879, 8
          %s1883 = scalar_lea.hbm %s19, %s1882
          %s1884 = sshll.u32 [#allocation3], 4
          %s1885 = int_to_ptr.vmem [resolvable:$true] %s1884
          %s1886 = sshll.u32 %s1883, 4
          %s1887 = int_to_ptr.hbm [resolvable:$true] %s1886
          %1892 = dma.vmem_to_hbm [thread:$0]  %s1885, 256, %s1887, [#allocation4], 128, 128, 8
        $region108: #{tpu_custom_call.1} parent=95 // pred_fallthru
          _
        // Predicated region
        $region109: #{tpu_custom_call.1} parent=95 // pred_check
          %p1893 = pneg %p530
        $region110: #{tpu_custom_call.1} parent=95 // pred_check_branch
          %1895 = sbr.rel (%p1893) target = $region112
        $region111: #{tpu_custom_call.1} parent=95 // pred_region
          %1897 = dma.done [#allocation4], 256
        $region112: #{tpu_custom_call.1} parent=95 // pred_fallthru
          _
      $region96: #{tpu_custom_call.1} parent=5 // pred_fallthru
        _
      %p1898 = scmp.le.s32.totalorder 2, %s26
      // Predicated region
      $region113: #{tpu_custom_call.1} parent=5 // pred_check
        %p1899 = pneg %p1898
      $region114: #{tpu_custom_call.1} parent=5 // pred_check_branch
        %1901 = sbr.rel (%p1899) target = $region116
      $region115: #{tpu_custom_call.1} parent=5 // pred_region
        %s1902 = ssub.s32 %s26, 2
      $region116: #{tpu_custom_call.1} parent=5 // pred_fallthru
        _
    $region6: #{tpu_custom_call.1} parent=1 // loop_footer
      %s30 = sadd.s32 1, %s26
    $region7: #{tpu_custom_call.1} parent=1 // loop_footer_branch
      %25 = sbr.rel target = $region3
    $region8: #{tpu_custom_call.1} parent=1 // loop_exit
      _
    %1903 = vsyncpa [#allocation4], 1
    %s1904 = scalar_lea.sflag [#allocation4], 1
    %1905 = vsyncpa %s1904, 1

</llo_original>
